<compile_context>
chip_gen: v7x
topology: tpu7x:2x2x1
jax: 0.10.0
libtpu: 0.0.40
codegen_flags: <defaults>
</compile_context>

<pallas_src>
import functools
import math

import jax
import jax.numpy as jnp
from jax import lax
from jax.experimental import pallas as pl
from jax.experimental.pallas import tpu as pltpu


# ----------------------------- Pallas kernel --------------------------------

def fused_kernel(x_ref, lap_ref, w_ref, b_ref, g_ref, bt_ref, comb_ref,
                 o_ref, x0_ref, x1_ref, acc_ref, *, inv_n, compute_dtype):
    """Pool + Chebyshev conv + bias + BatchNorm(training) + ReLU.

    Grid axis 0 = Chebyshev term index k (sequential recursion).

    x_ref:    (P, V, Cp)   pooled-input slab, col = b*Fin + fin (zero padded)
    lap_ref:  (V, V)       dense rescaled Laplacian
    w_ref:    (1, Cp, Np)  block-diagonal weight for term k (streamed per step)
    b_ref:    (1, Np)      conv bias tiled per batch (zeros in pad lanes)
    g_ref:    (1, Np)      BN gamma tiled per batch (zeros in pad lanes)
    bt_ref:   (1, Np)      BN beta  tiled per batch (zeros in pad lanes)
    comb_ref: (Np, Np)     per-batch -> per-feature "combiner" (0/1 matrix)
    o_ref:    (V, Np)      output, col = b*Fout + fout
    x0_ref, x1_ref: (V, Cp) f32 recursion carries (ping-pong)
    acc_ref:  (V, Np)      f32 conv accumulator
    """
    k = pl.program_id(0)
    n_k = pl.num_programs(0)
    cdt = compute_dtype

    w_k = w_ref[0].astype(cdt)                       # (Cp, Np)

    def term_matmul(xk):
        return jnp.dot(xk.astype(cdt), w_k, preferred_element_type=jnp.float32)

    # ---- k == 0: Healpix max-pool (pairwise VPU tree) + first Cheb term ----
    @pl.when(k == 0)
    def _():
        vals = [x_ref[p] for p in range(x_ref.shape[0])]
        while len(vals) > 1:                          # tree reduce, depth log2(P)
            nxt = [jnp.maximum(vals[i], vals[i + 1])
                   for i in range(0, len(vals) - 1, 2)]
            if len(vals) % 2:
                nxt.append(vals[-1])
            vals = nxt
        pooled = vals[0]                              # (V, Cp), lane-dense
        x0_ref[...] = pooled
        acc_ref[...] = term_matmul(pooled)

    # ---- k == 1: x1 = L @ x0 ----
    @pl.when(k == 1)
    def _():
        x1 = jnp.dot(lap_ref[...].astype(cdt), x0_ref[...].astype(cdt),
                     preferred_element_type=jnp.float32)
        x1_ref[...] = x1
        acc_ref[...] += term_matmul(x1)

    # ---- k >= 2: x_k = 2 L x_{k-1} - x_{k-2}, ping-pong the carries ----
    def cheb_step(src_ref, dst_ref):
        t = jnp.dot(lap_ref[...].astype(cdt), src_ref[...].astype(cdt),
                    preferred_element_type=jnp.float32)
        xk = 2.0 * t - dst_ref[...]
        dst_ref[...] = xk
        acc_ref[...] += term_matmul(xk)

    @pl.when(jnp.logical_and(k >= 2, k % 2 == 0))
    def _():
        cheb_step(x1_ref, x0_ref)

    @pl.when(jnp.logical_and(k >= 2, k % 2 == 1))
    def _():
        cheb_step(x0_ref, x1_ref)

    # ---- epilogue: bias + BatchNorm1d (training stats) + ReLU, one store ----
    @pl.when(k == n_k - 1)
    def _():
        y = acc_ref[...] + b_ref[...]
        # per-feature stats over (B, V): column sums, then the MXU combiner
        # matmul folds the per-batch lane groups into per-feature totals
        # (replicated back into every batch's lane group).
        csum = jnp.sum(y, axis=0, keepdims=True)                     # (1, Np)
        mean = jnp.dot(csum, comb_ref[...],
                       preferred_element_type=jnp.float32) * inv_n
        d = y - mean                                   # two-pass var: no cancellation
        dsq = jnp.sum(d * d, axis=0, keepdims=True)
        var = jnp.dot(dsq, comb_ref[...],
                      preferred_element_type=jnp.float32) * inv_n
        scale = g_ref[...] * lax.rsqrt(var + 1e-5)     # folded BN affine
        shift = bt_ref[...] - mean * scale
        o_ref[...] = jnp.maximum(y * scale + shift, 0.0)


# ------------------------------ JAX wrapper ----------------------------------

def spherical_cheb_bn_pool(x, lap, weight, bias, gamma, beta, pool_size,
                           use_bf16=False):
    B, Vin, Fin = x.shape
    K, _, Fout = weight.shape
    P = pool_size
    V = Vin // P
    C = B * Fin                       # batch-folded input columns
    N = B * Fout                      # batch-folded output columns
    Cp = max(128, ((C + 127) // 128) * 128)   # lane-dense input width
    Np = max(128, ((N + 127) // 128) * 128)   # lane-dense output width
    op_dtype = jnp.bfloat16 if use_bf16 else jnp.float32

    f32 = jnp.float32

    # --- layout plumbing (cheap wrapper-side XLA, no compute) ---
    # x -> (P, V, B*Fin), column index b*Fin + fin, zero-padded to Cp lanes.
    xs = (x.astype(f32)
           .reshape(B, V, P, Fin)
           .transpose(2, 1, 0, 3)
           .reshape(P, V, C))
    xp = jnp.zeros((P, V, Cp), f32).at[:, :, :C].set(xs)

    # Effective per-term weight reproducing torch's exact (k, fin) flattening
    # pairing: stacked activation column fin*K + k pairs with weight.view row
    # fin*K + k.  Then expand to a block-diagonal (B*Fin, B*Fout) matrix per
    # term so the batch-folded matmul needs no in-kernel repack.
    w_flat = weight.astype(f32).reshape(K * Fin, Fout)       # row = k*Fin + fin
    w_terms = (w_flat.reshape(Fin, K, Fout)                  # [fin, k] = row fin*K + k
                     .transpose(1, 0, 2))                    # (K, Fin, Fout)
    eye_b = jnp.eye(B, dtype=f32)
    wbd_core = jnp.einsum('bc,kio->kbico', eye_b, w_terms).reshape(K, C, N)
    wbd = jnp.zeros((K, Cp, Np), f32).at[:, :C, :N].set(wbd_core)
    wbd = wbd.astype(op_dtype)

    # bias / gamma / beta tiled per batch along the lane axis (pads are zero).
    b_row = jnp.zeros((1, Np), f32).at[0, :N].set(jnp.tile(bias.astype(f32), B))
    g_row = jnp.zeros((1, Np), f32).at[0, :N].set(jnp.tile(gamma.astype(f32), B))
    bt_row = jnp.zeros((1, Np), f32).at[0, :N].set(jnp.tile(beta.astype(f32), B))

    # Combiner: comb[b*Fout+f, b2*Fout+f] = 1  -> per-feature totals via MXU.
    comb_core = jnp.tile(jnp.eye(Fout, dtype=f32), (B, B))
    comb = jnp.zeros((Np, Np), f32).at[:N, :N].set(comb_core)

    lap_in = lap.astype(op_dtype)

    # VMEM budget: double-buffered input blocks + scratch, with headroom.
    opb = 2 if use_bf16 else 4
    resident = (2 * P * V * Cp * 4          # x slab
                + 2 * V * V * opb           # laplacian
                + 2 * Cp * Np * opb         # streamed per-term weight
                + 2 * 3 * Np * 4            # bias/gamma/beta rows
                + 2 * Np * Np * 4           # combiner
                + 2 * V * Np * 4            # output block
                + (2 * V * Cp + V * Np) * 4)  # scratch
    vmem_limit = int(min(128 * 1024 * 1024, max(2 * resident, 16 * 1024 * 1024)))

    kernel = functools.partial(fused_kernel, inv_n=1.0 / (B * V),
                               compute_dtype=op_dtype)

    out = pl.pallas_call(
        kernel,
        out_shape=jax.ShapeDtypeStruct((V, Np), f32),
        grid=(K,),
        in_specs=[
            pl.BlockSpec((P, V, Cp), lambda k: (0, 0, 0)),
            pl.BlockSpec((V, V), lambda k: (0, 0)),
            pl.BlockSpec((1, Cp, Np), lambda k: (k, 0, 0)),   # streamed per term
            pl.BlockSpec((1, Np), lambda k: (0, 0)),
            pl.BlockSpec((1, Np), lambda k: (0, 0)),
            pl.BlockSpec((1, Np), lambda k: (0, 0)),
            pl.BlockSpec((Np, Np), lambda k: (0, 0)),
        ],
        out_specs=pl.BlockSpec((V, Np), lambda k: (0, 0)),
        scratch_shapes=[
            pltpu.VMEM((V, Cp), f32),   # x_{k-2} / ping
            pltpu.VMEM((V, Cp), f32),   # x_{k-1} / pong
            pltpu.VMEM((V, Np), f32),   # conv accumulator
        ],
        compiler_params=pltpu.CompilerParams(
            dimension_semantics=("arbitrary",),   # recursion is sequential in k
            vmem_limit_bytes=vmem_limit),
    )(xp, lap_in, wbd, b_row, g_row, bt_row, comb)

    # (V, b*Fout + fout) -> (B, V, Fout)
    return out[:, :N].reshape(V, B, Fout).transpose(1, 0, 2)


# ------------------------ pure-JAX reference (PyTorch semantics) -------------

def ref_forward(x, lap, weight, bias, gamma, beta, pool_size):
    B, Vin, Fin = x.shape
    K, _, Fout = weight.shape
    V = Vin // pool_size
    # Healpix-style max pool over vertices (MaxPool1d after permute(0,2,1))
    xp = x.reshape(B, V, pool_size, Fin).max(axis=2)           # (B, V, Fin)
    # cheb_conv, following the torch code's exact reshapes
    x0 = jnp.transpose(xp, (1, 2, 0)).reshape(V, Fin * B)
    xs = [x0]
    if K > 0:
        x1 = lap @ x0
        xs.append(x1)
        for _ in range(1, K - 1):
            x2 = 2 * (lap @ x1) - x0
            xs.append(x2)
            x0, x1 = x1, x2
    stack = jnp.stack(xs, 0).reshape(K, V, Fin, B)
    stack = jnp.transpose(stack, (3, 1, 2, 0)).reshape(B * V, Fin * K)
    w = weight.reshape(Fin * K, Fout)
    y = (stack @ w).reshape(B, V, Fout) + bias
    # BatchNorm1d in training mode on (B, C, V): stats over (B, V), biased var
    yc = jnp.transpose(y, (0, 2, 1))
    mean = yc.mean(axis=(0, 2), keepdims=True)
    var = ((yc - mean) ** 2).mean(axis=(0, 2), keepdims=True)
    yn = (yc - mean) / jnp.sqrt(var + 1e-5) * gamma.reshape(1, -1, 1) \
        + beta.reshape(1, -1, 1)
    yn = jnp.transpose(yn, (0, 2, 1))
    return jnp.maximum(yn, 0.0)


# --------------------------------- main --------------------------------------

if __name__ == "__main__":
    B, Vin, Fin, Fout, K, P = 2, 64, 4, 8, 3, 4
    V = Vin // P

    key = jax.random.PRNGKey(0)
    kx, kl, kw = jax.random.split(key, 3)

    x = jax.random.normal(kx, (B, Vin, Fin), dtype=jnp.float32)

    # synthetic dense symmetric "rescaled Laplacian" (the real one is sparse)
    A = jax.random.normal(kl, (V, V), dtype=jnp.float32)
    lap = 0.1 * (A + A.T) / 2.0

    # ChebConv.kaiming_initialization: weight ~ N(0, sqrt(2/(Fin*K))), bias=0.01
    std = math.sqrt(2.0 / (Fin * K))
    weight = std * jax.random.normal(kw, (K, Fin, Fout), dtype=jnp.float32)
    bias = jnp.full((Fout,), 0.01, dtype=jnp.float32)

    # BatchNorm1d params at init: gamma=1, beta=0
    gamma = jnp.ones((Fout,), dtype=jnp.float32)
    beta = jnp.zeros((Fout,), dtype=jnp.float32)

    ref = ref_forward(x, lap, weight, bias, gamma, beta, P)

    # f32 path: exact-semantics check
    out = spherical_cheb_bn_pool(x, lap, weight, bias, gamma, beta, P)
    out = jax.block_until_ready(out)
    assert out.shape == (B, V, Fout)
    assert jnp.allclose(out, ref, atol=1e-4, rtol=1e-4), \
        f"f32 max err {jnp.max(jnp.abs(out - ref))}"

    # bf16 MXU-operand path (f32 accumulation / recursion carry): loose check
    out_bf16 = spherical_cheb_bn_pool(x, lap, weight, bias, gamma, beta, P,
                                      use_bf16=True)
    out_bf16 = jax.block_until_ready(out_bf16)
    assert jnp.allclose(out_bf16, ref, atol=1e-1, rtol=1e-1), \
        f"bf16 max err {jnp.max(jnp.abs(out_bf16 - ref))}"

    print("KERNEL_OK")
</pallas_src>

<mosaic_0001>
module attributes {stable_mosaic.version = 11 : i64} {
  func.func @fused_kernel(%arg0: i32, %arg1: memref<4x16x128xf32, #tpu.memory_space<vmem>>, %arg2: memref<16x16xf32, #tpu.memory_space<vmem>>, %arg3: memref<1x128x128xf32, #tpu.memory_space<vmem>>, %arg4: memref<1x128xf32, #tpu.memory_space<vmem>>, %arg5: memref<1x128xf32, #tpu.memory_space<vmem>>, %arg6: memref<1x128xf32, #tpu.memory_space<vmem>>, %arg7: memref<128x128xf32, #tpu.memory_space<vmem>>, %arg8: memref<16x128xf32, #tpu.memory_space<vmem>>, %arg9: memref<16x128xf32, #tpu.memory_space<vmem>>, %arg10: memref<16x128xf32, #tpu.memory_space<vmem>>, %arg11: memref<16x128xf32, #tpu.memory_space<vmem>>) attributes {dimension_semantics = [#tpu.dimension_semantics<arbitrary>], iteration_bounds = array<i64: 3>, scalar_prefetch = 0 : i64, scratch_operands = 3 : i64, tpu.core_type = #tpu.core_type<tc>, window_params = [{pipeline_mode = #tpu.pipeline_mode<synchronous>, transform_indices = @transform_0, window_bounds = array<i64: 4, 16, 128>}, {pipeline_mode = #tpu.pipeline_mode<synchronous>, transform_indices = @transform_1, window_bounds = array<i64: 16, 16>}, {transform_indices = @transform_2, window_bounds = array<i64: 1, 128, 128>}, {pipeline_mode = #tpu.pipeline_mode<synchronous>, transform_indices = @transform_3, window_bounds = array<i64: 1, 128>}, {pipeline_mode = #tpu.pipeline_mode<synchronous>, transform_indices = @transform_4, window_bounds = array<i64: 1, 128>}, {pipeline_mode = #tpu.pipeline_mode<synchronous>, transform_indices = @transform_5, window_bounds = array<i64: 1, 128>}, {pipeline_mode = #tpu.pipeline_mode<synchronous>, transform_indices = @transform_6, window_bounds = array<i64: 128, 128>}, {pipeline_mode = #tpu.pipeline_mode<synchronous>, transform_indices = @transform_7, window_bounds = array<i64: 16, 128>}]} {
    %c0 = arith.constant 0 : index
    %c0_0 = arith.constant 0 : index
    %c0_1 = arith.constant 0 : index
    %0 = vector.load %arg3[%c0, %c0_0, %c0_1] : memref<1x128x128xf32, #tpu.memory_space<vmem>>, vector<1x128x128xf32>
    %1 = vector.shape_cast %0 : vector<1x128x128xf32> to vector<128x128xf32>
    %c0_i32 = arith.constant 0 : i32
    %2 = arith.cmpi eq, %arg0, %c0_i32 : i32
    %3 = arith.extui %2 : i1 to i32
    %c0_i32_2 = arith.constant 0 : i32
    %4 = arith.cmpi ne, %3, %c0_i32_2 : i32
    scf.if %4 {
      %c0_23 = arith.constant 0 : index
      %c0_24 = arith.constant 0 : index
      %c0_25 = arith.constant 0 : index
      %41 = vector.load %arg1[%c0_23, %c0_24, %c0_25] : memref<4x16x128xf32, #tpu.memory_space<vmem>>, vector<1x16x128xf32>
      %42 = vector.shape_cast %41 : vector<1x16x128xf32> to vector<16x128xf32>
      %c1 = arith.constant 1 : index
      %c0_26 = arith.constant 0 : index
      %c0_27 = arith.constant 0 : index
      %43 = vector.load %arg1[%c1, %c0_26, %c0_27] : memref<4x16x128xf32, #tpu.memory_space<vmem>>, vector<1x16x128xf32>
      %44 = vector.shape_cast %43 : vector<1x16x128xf32> to vector<16x128xf32>
      %c2 = arith.constant 2 : index
      %c0_28 = arith.constant 0 : index
      %c0_29 = arith.constant 0 : index
      %45 = vector.load %arg1[%c2, %c0_28, %c0_29] : memref<4x16x128xf32, #tpu.memory_space<vmem>>, vector<1x16x128xf32>
      %46 = vector.shape_cast %45 : vector<1x16x128xf32> to vector<16x128xf32>
      %c3 = arith.constant 3 : index
      %c0_30 = arith.constant 0 : index
      %c0_31 = arith.constant 0 : index
      %47 = vector.load %arg1[%c3, %c0_30, %c0_31] : memref<4x16x128xf32, #tpu.memory_space<vmem>>, vector<1x16x128xf32>
      %48 = vector.shape_cast %47 : vector<1x16x128xf32> to vector<16x128xf32>
      %49 = arith.maximumf %42, %44 : vector<16x128xf32>
      %50 = arith.maximumf %46, %48 : vector<16x128xf32>
      %51 = arith.maximumf %49, %50 : vector<16x128xf32>
      %c0_32 = arith.constant 0 : index
      %c0_33 = arith.constant 0 : index
      %52 = vector.load %arg9[%c0_32, %c0_33] : memref<16x128xf32, #tpu.memory_space<vmem>>, vector<16x128xf32>
      tpu.vector_store %arg9[%c0_32, %c0_33], %51 {strides = array<i32>} : memref<16x128xf32, #tpu.memory_space<vmem>>, vector<16x128xf32>,
      %cst = arith.constant dense<0.000000e+00> : vector<16x128xf32>
      %53 = tpu.matmul %51, %1, %cst {dimension_numbers = #tpu.dot_dimension_numbers<[1], [0], [0], [1], [0, 0, 1, 1], [], []>} : vector<16x128xf32>, vector<128x128xf32>, vector<16x128xf32> -> vector<16x128xf32>
      %c0_34 = arith.constant 0 : index
      %c0_35 = arith.constant 0 : index
      %54 = vector.load %arg11[%c0_34, %c0_35] : memref<16x128xf32, #tpu.memory_space<vmem>>, vector<16x128xf32>
      tpu.vector_store %arg11[%c0_34, %c0_35], %53 {strides = array<i32>} : memref<16x128xf32, #tpu.memory_space<vmem>>, vector<16x128xf32>,
    } else {
    }
    %c1_i32 = arith.constant 1 : i32
    %5 = arith.cmpi eq, %arg0, %c1_i32 : i32
    %6 = arith.extui %5 : i1 to i32
    %c0_i32_3 = arith.constant 0 : i32
    %7 = arith.cmpi ne, %6, %c0_i32_3 : i32
    scf.if %7 {
      %c0_23 = arith.constant 0 : index
      %c0_24 = arith.constant 0 : index
      %41 = vector.load %arg2[%c0_23, %c0_24] : memref<16x16xf32, #tpu.memory_space<vmem>>, vector<16x16xf32>
      %c0_25 = arith.constant 0 : index
      %c0_26 = arith.constant 0 : index
      %42 = vector.load %arg9[%c0_25, %c0_26] : memref<16x128xf32, #tpu.memory_space<vmem>>, vector<16x128xf32>
      %cst = arith.constant dense<0.000000e+00> : vector<16x128xf32>
      %43 = tpu.matmul %41, %42, %cst {dimension_numbers = #tpu.dot_dimension_numbers<[1], [0], [0], [1], [0, 0, 1, 1], [], []>} : vector<16x16xf32>, vector<16x128xf32>, vector<16x128xf32> -> vector<16x128xf32>
      %c0_27 = arith.constant 0 : index
      %c0_28 = arith.constant 0 : index
      %44 = vector.load %arg10[%c0_27, %c0_28] : memref<16x128xf32, #tpu.memory_space<vmem>>, vector<16x128xf32>
      tpu.vector_store %arg10[%c0_27, %c0_28], %43 {strides = array<i32>} : memref<16x128xf32, #tpu.memory_space<vmem>>, vector<16x128xf32>,
      %c0_29 = arith.constant 0 : index
      %c0_30 = arith.constant 0 : index
      %45 = vector.load %arg11[%c0_29, %c0_30] : memref<16x128xf32, #tpu.memory_space<vmem>>, vector<16x128xf32>
      %cst_31 = arith.constant dense<0.000000e+00> : vector<16x128xf32>
      %46 = tpu.matmul %43, %1, %cst_31 {dimension_numbers = #tpu.dot_dimension_numbers<[1], [0], [0], [1], [0, 0, 1, 1], [], []>} : vector<16x128xf32>, vector<128x128xf32>, vector<16x128xf32> -> vector<16x128xf32>
      %47 = arith.addf %45, %46 : vector<16x128xf32>
      %c0_32 = arith.constant 0 : index
      %c0_33 = arith.constant 0 : index
      %48 = vector.load %arg11[%c0_32, %c0_33] : memref<16x128xf32, #tpu.memory_space<vmem>>, vector<16x128xf32>
      tpu.vector_store %arg11[%c0_32, %c0_33], %47 {strides = array<i32>} : memref<16x128xf32, #tpu.memory_space<vmem>>, vector<16x128xf32>,
    } else {
    }
    %c2_i32 = arith.constant 2 : i32
    %8 = arith.cmpi sge, %arg0, %c2_i32 : i32
    %c2_i32_4 = arith.constant 2 : i32
    %c0_i32_5 = arith.constant 0 : i32
    %9 = arith.cmpi eq, %c2_i32_4, %c0_i32_5 : i32
    %c1_i32_6 = arith.constant 1 : i32
    %10 = arith.select %9, %c1_i32_6, %c2_i32_4 : i32
    %11 = arith.remsi %arg0, %10 : i32
    %c0_i32_7 = arith.constant 0 : i32
    %12 = arith.cmpi ne, %11, %c0_i32_7 : i32
    %c0_i32_8 = arith.constant 0 : i32
    %13 = arith.cmpi slt, %11, %c0_i32_8 : i32
    %c0_i32_9 = arith.constant 0 : i32
    %14 = arith.cmpi slt, %10, %c0_i32_9 : i32
    %15 = arith.xori %13, %14 : i1
    %16 = arith.andi %15, %12 : i1
    %17 = arith.addi %11, %10 : i32
    %18 = arith.select %16, %17, %11 : i32
    %c0_i32_10 = arith.constant 0 : i32
    %19 = arith.cmpi eq, %18, %c0_i32_10 : i32
    %20 = arith.andi %8, %19 : i1
    %21 = arith.extui %20 : i1 to i32
    %c0_i32_11 = arith.constant 0 : i32
    %22 = arith.cmpi ne, %21, %c0_i32_11 : i32
    scf.if %22 {
      %c0_23 = arith.constant 0 : index
      %c0_24 = arith.constant 0 : index
      %41 = vector.load %arg2[%c0_23, %c0_24] : memref<16x16xf32, #tpu.memory_space<vmem>>, vector<16x16xf32>
      %c0_25 = arith.constant 0 : index
      %c0_26 = arith.constant 0 : index
      %42 = vector.load %arg10[%c0_25, %c0_26] : memref<16x128xf32, #tpu.memory_space<vmem>>, vector<16x128xf32>
      %cst = arith.constant dense<0.000000e+00> : vector<16x128xf32>
      %43 = tpu.matmul %41, %42, %cst {dimension_numbers = #tpu.dot_dimension_numbers<[1], [0], [0], [1], [0, 0, 1, 1], [], []>} : vector<16x16xf32>, vector<16x128xf32>, vector<16x128xf32> -> vector<16x128xf32>
      %cst_27 = arith.constant 2.000000e+00 : f32
      %44 = vector.broadcast %cst_27 : f32 to vector<16x128xf32>
      %45 = arith.mulf %44, %43 : vector<16x128xf32>
      %c0_28 = arith.constant 0 : index
      %c0_29 = arith.constant 0 : index
      %46 = vector.load %arg9[%c0_28, %c0_29] : memref<16x128xf32, #tpu.memory_space<vmem>>, vector<16x128xf32>
      %47 = arith.subf %45, %46 : vector<16x128xf32>
      %c0_30 = arith.constant 0 : index
      %c0_31 = arith.constant 0 : index
      %48 = vector.load %arg9[%c0_30, %c0_31] : memref<16x128xf32, #tpu.memory_space<vmem>>, vector<16x128xf32>
      tpu.vector_store %arg9[%c0_30, %c0_31], %47 {strides = array<i32>} : memref<16x128xf32, #tpu.memory_space<vmem>>, vector<16x128xf32>,
      %c0_32 = arith.constant 0 : index
      %c0_33 = arith.constant 0 : index
      %49 = vector.load %arg11[%c0_32, %c0_33] : memref<16x128xf32, #tpu.memory_space<vmem>>, vector<16x128xf32>
      %cst_34 = arith.constant dense<0.000000e+00> : vector<16x128xf32>
      %50 = tpu.matmul %47, %1, %cst_34 {dimension_numbers = #tpu.dot_dimension_numbers<[1], [0], [0], [1], [0, 0, 1, 1], [], []>} : vector<16x128xf32>, vector<128x128xf32>, vector<16x128xf32> -> vector<16x128xf32>
      %51 = arith.addf %49, %50 : vector<16x128xf32>
      %c0_35 = arith.constant 0 : index
      %c0_36 = arith.constant 0 : index
      %52 = vector.load %arg11[%c0_35, %c0_36] : memref<16x128xf32, #tpu.memory_space<vmem>>, vector<16x128xf32>
      tpu.vector_store %arg11[%c0_35, %c0_36], %51 {strides = array<i32>} : memref<16x128xf32, #tpu.memory_space<vmem>>, vector<16x128xf32>,
    } else {
    }
    %c2_i32_12 = arith.constant 2 : i32
    %23 = arith.cmpi sge, %arg0, %c2_i32_12 : i32
    %c2_i32_13 = arith.constant 2 : i32
    %c0_i32_14 = arith.constant 0 : i32
    %24 = arith.cmpi eq, %c2_i32_13, %c0_i32_14 : i32
    %c1_i32_15 = arith.constant 1 : i32
    %25 = arith.select %24, %c1_i32_15, %c2_i32_13 : i32
    %26 = arith.remsi %arg0, %25 : i32
    %c0_i32_16 = arith.constant 0 : i32
    %27 = arith.cmpi ne, %26, %c0_i32_16 : i32
    %c0_i32_17 = arith.constant 0 : i32
    %28 = arith.cmpi slt, %26, %c0_i32_17 : i32
    %c0_i32_18 = arith.constant 0 : i32
    %29 = arith.cmpi slt, %25, %c0_i32_18 : i32
    %30 = arith.xori %28, %29 : i1
    %31 = arith.andi %30, %27 : i1
    %32 = arith.addi %26, %25 : i32
    %33 = arith.select %31, %32, %26 : i32
    %c1_i32_19 = arith.constant 1 : i32
    %34 = arith.cmpi eq, %33, %c1_i32_19 : i32
    %35 = arith.andi %23, %34 : i1
    %36 = arith.extui %35 : i1 to i32
    %c0_i32_20 = arith.constant 0 : i32
    %37 = arith.cmpi ne, %36, %c0_i32_20 : i32
    scf.if %37 {
      %c0_23 = arith.constant 0 : index
      %c0_24 = arith.constant 0 : index
      %41 = vector.load %arg2[%c0_23, %c0_24] : memref<16x16xf32, #tpu.memory_space<vmem>>, vector<16x16xf32>
      %c0_25 = arith.constant 0 : index
      %c0_26 = arith.constant 0 : index
      %42 = vector.load %arg9[%c0_25, %c0_26] : memref<16x128xf32, #tpu.memory_space<vmem>>, vector<16x128xf32>
      %cst = arith.constant dense<0.000000e+00> : vector<16x128xf32>
      %43 = tpu.matmul %41, %42, %cst {dimension_numbers = #tpu.dot_dimension_numbers<[1], [0], [0], [1], [0, 0, 1, 1], [], []>} : vector<16x16xf32>, vector<16x128xf32>, vector<16x128xf32> -> vector<16x128xf32>
      %cst_27 = arith.constant 2.000000e+00 : f32
      %44 = vector.broadcast %cst_27 : f32 to vector<16x128xf32>
      %45 = arith.mulf %44, %43 : vector<16x128xf32>
      %c0_28 = arith.constant 0 : index
      %c0_29 = arith.constant 0 : index
      %46 = vector.load %arg10[%c0_28, %c0_29] : memref<16x128xf32, #tpu.memory_space<vmem>>, vector<16x128xf32>
      %47 = arith.subf %45, %46 : vector<16x128xf32>
      %c0_30 = arith.constant 0 : index
      %c0_31 = arith.constant 0 : index
      %48 = vector.load %arg10[%c0_30, %c0_31] : memref<16x128xf32, #tpu.memory_space<vmem>>, vector<16x128xf32>
      tpu.vector_store %arg10[%c0_30, %c0_31], %47 {strides = array<i32>} : memref<16x128xf32, #tpu.memory_space<vmem>>, vector<16x128xf32>,
      %c0_32 = arith.constant 0 : index
      %c0_33 = arith.constant 0 : index
      %49 = vector.load %arg11[%c0_32, %c0_33] : memref<16x128xf32, #tpu.memory_space<vmem>>, vector<16x128xf32>
      %cst_34 = arith.constant dense<0.000000e+00> : vector<16x128xf32>
      %50 = tpu.matmul %47, %1, %cst_34 {dimension_numbers = #tpu.dot_dimension_numbers<[1], [0], [0], [1], [0, 0, 1, 1], [], []>} : vector<16x128xf32>, vector<128x128xf32>, vector<16x128xf32> -> vector<16x128xf32>
      %51 = arith.addf %49, %50 : vector<16x128xf32>
      %c0_35 = arith.constant 0 : index
      %c0_36 = arith.constant 0 : index
      %52 = vector.load %arg11[%c0_35, %c0_36] : memref<16x128xf32, #tpu.memory_space<vmem>>, vector<16x128xf32>
      tpu.vector_store %arg11[%c0_35, %c0_36], %51 {strides = array<i32>} : memref<16x128xf32, #tpu.memory_space<vmem>>, vector<16x128xf32>,
    } else {
    }
    %c2_i32_21 = arith.constant 2 : i32
    %38 = arith.cmpi eq, %arg0, %c2_i32_21 : i32
    %39 = arith.extui %38 : i1 to i32
    %c0_i32_22 = arith.constant 0 : i32
    %40 = arith.cmpi ne, %39, %c0_i32_22 : i32
    scf.if %40 {
      %c0_23 = arith.constant 0 : index
      %c0_24 = arith.constant 0 : index
      %41 = vector.load %arg11[%c0_23, %c0_24] : memref<16x128xf32, #tpu.memory_space<vmem>>, vector<16x128xf32>
      %c0_25 = arith.constant 0 : index
      %c0_26 = arith.constant 0 : index
      %42 = vector.load %arg4[%c0_25, %c0_26] : memref<1x128xf32, #tpu.memory_space<vmem>>, vector<1x128xf32>
      %43 = vector.broadcast %42 : vector<1x128xf32> to vector<16x128xf32>
      %44 = arith.addf %41, %43 : vector<16x128xf32>
      %cst = arith.constant dense<0.000000e+00> : vector<128xf32>
      %45 = vector.multi_reduction <add>, %44, %cst [0] : vector<16x128xf32> to vector<128xf32>
      %46 = vector.shape_cast %45 : vector<128xf32> to vector<1x128xf32>
      %c0_27 = arith.constant 0 : index
      %c0_28 = arith.constant 0 : index
      %47 = vector.load %arg7[%c0_27, %c0_28] : memref<128x128xf32, #tpu.memory_space<vmem>>, vector<128x128xf32>
      %cst_29 = arith.constant dense<0.000000e+00> : vector<1x128xf32>
      %48 = tpu.matmul %46, %47, %cst_29 {dimension_numbers = #tpu.dot_dimension_numbers<[1], [0], [0], [1], [0, 0, 1, 1], [], []>} : vector<1x128xf32>, vector<128x128xf32>, vector<1x128xf32> -> vector<1x128xf32>
      %cst_30 = arith.constant 3.125000e-02 : f32
      %49 = vector.broadcast %cst_30 : f32 to vector<1x128xf32>
      %50 = arith.mulf %48, %49 : vector<1x128xf32>
      %51 = vector.broadcast %50 : vector<1x128xf32> to vector<16x128xf32>
      %52 = arith.subf %44, %51 : vector<16x128xf32>
      %53 = arith.mulf %52, %52 : vector<16x128xf32>
      %cst_31 = arith.constant dense<0.000000e+00> : vector<128xf32>
      %54 = vector.multi_reduction <add>, %53, %cst_31 [0] : vector<16x128xf32> to vector<128xf32>
      %55 = vector.shape_cast %54 : vector<128xf32> to vector<1x128xf32>
      %c0_32 = arith.constant 0 : index
      %c0_33 = arith.constant 0 : index
      %56 = vector.load %arg7[%c0_32, %c0_33] : memref<128x128xf32, #tpu.memory_space<vmem>>, vector<128x128xf32>
      %cst_34 = arith.constant dense<0.000000e+00> : vector<1x128xf32>
      %57 = tpu.matmul %55, %56, %cst_34 {dimension_numbers = #tpu.dot_dimension_numbers<[1], [0], [0], [1], [0, 0, 1, 1], [], []>} : vector<1x128xf32>, vector<128x128xf32>, vector<1x128xf32> -> vector<1x128xf32>
      %cst_35 = arith.constant 3.125000e-02 : f32
      %58 = vector.broadcast %cst_35 : f32 to vector<1x128xf32>
      %59 = arith.mulf %57, %58 : vector<1x128xf32>
      %c0_36 = arith.constant 0 : index
      %c0_37 = arith.constant 0 : index
      %60 = vector.load %arg5[%c0_36, %c0_37] : memref<1x128xf32, #tpu.memory_space<vmem>>, vector<1x128xf32>
      %cst_38 = arith.constant 9.99999974E-6 : f32
      %61 = vector.broadcast %cst_38 : f32 to vector<1x128xf32>
      %62 = arith.addf %59, %61 : vector<1x128xf32>
      %63 = math.rsqrt %62 : vector<1x128xf32>
      %64 = arith.mulf %60, %63 : vector<1x128xf32>
      %c0_39 = arith.constant 0 : index
      %c0_40 = arith.constant 0 : index
      %65 = vector.load %arg6[%c0_39, %c0_40] : memref<1x128xf32, #tpu.memory_space<vmem>>, vector<1x128xf32>
      %66 = arith.mulf %50, %64 : vector<1x128xf32>
      %67 = arith.subf %65, %66 : vector<1x128xf32>
      %68 = vector.broadcast %64 : vector<1x128xf32> to vector<16x128xf32>
      %69 = arith.mulf %44, %68 : vector<16x128xf32>
      %70 = vector.broadcast %67 : vector<1x128xf32> to vector<16x128xf32>
      %71 = arith.addf %69, %70 : vector<16x128xf32>
      %cst_41 = arith.constant 0.000000e+00 : f32
      %72 = vector.broadcast %cst_41 : f32 to vector<16x128xf32>
      %73 = arith.maximumf %71, %72 : vector<16x128xf32>
      %c0_42 = arith.constant 0 : index
      %c0_43 = arith.constant 0 : index
      %74 = vector.load %arg8[%c0_42, %c0_43] : memref<16x128xf32, #tpu.memory_space<vmem>>, vector<16x128xf32>
      tpu.vector_store %arg8[%c0_42, %c0_43], %73 {strides = array<i32>} : memref<16x128xf32, #tpu.memory_space<vmem>>, vector<16x128xf32>,
    } else {
    }
    return
  }
  func.func @transform_0(%arg0: i32) -> (i32, i32, i32) {
    %c0_i32 = arith.constant 0 : i32
    %c0_i32_0 = arith.constant 0 : i32
    %c0_i32_1 = arith.constant 0 : i32
    %c0_i32_2 = arith.constant 0 : i32
    return %c0_i32, %c0_i32_0, %c0_i32_1 : i32, i32, i32
  }
  func.func @transform_1(%arg0: i32) -> (i32, i32) {
    %c0_i32 = arith.constant 0 : i32
    %c0_i32_0 = arith.constant 0 : i32
    %c0_i32_1 = arith.constant 0 : i32
    return %c0_i32, %c0_i32_0 : i32, i32
  }
  func.func @transform_2(%arg0: i32) -> (i32, i32, i32) {
    %c0_i32 = arith.constant 0 : i32
    %c0_i32_0 = arith.constant 0 : i32
    %c0_i32_1 = arith.constant 0 : i32
    return %arg0, %c0_i32, %c0_i32_0 : i32, i32, i32
  }
  func.func @transform_3(%arg0: i32) -> (i32, i32) {
    %c0_i32 = arith.constant 0 : i32
    %c0_i32_0 = arith.constant 0 : i32
    %c0_i32_1 = arith.constant 0 : i32
    return %c0_i32, %c0_i32_0 : i32, i32
  }
  func.func @transform_4(%arg0: i32) -> (i32, i32) {
    %c0_i32 = arith.constant 0 : i32
    %c0_i32_0 = arith.constant 0 : i32
    %c0_i32_1 = arith.constant 0 : i32
    return %c0_i32, %c0_i32_0 : i32, i32
  }
  func.func @transform_5(%arg0: i32) -> (i32, i32) {
    %c0_i32 = arith.constant 0 : i32
    %c0_i32_0 = arith.constant 0 : i32
    %c0_i32_1 = arith.constant 0 : i32
    return %c0_i32, %c0_i32_0 : i32, i32
  }
  func.func @transform_6(%arg0: i32) -> (i32, i32) {
    %c0_i32 = arith.constant 0 : i32
    %c0_i32_0 = arith.constant 0 : i32
    %c0_i32_1 = arith.constant 0 : i32
    return %c0_i32, %c0_i32_0 : i32, i32
  }
  func.func @transform_7(%arg0: i32) -> (i32, i32) {
    %c0_i32 = arith.constant 0 : i32
    %c0_i32_0 = arith.constant 0 : i32
    %c0_i32_1 = arith.constant 0 : i32
    return %c0_i32, %c0_i32_0 : i32, i32
  }
}

</mosaic_0001>

<llo_original>
// kernel: tpu_custom_call.1
$region0: #{tpu_custom_call.1}
  #allocation0 [shape = 'u32[]', space=smem, size = 0x4, offset = 0x4, fixed_abs, tag = 'smem constant byte address 0x4 - core index']
  #allocation1 [shape = 'u32[144,128]{1,0:T(1,128)}', space=vmem, size = 0x12000, scoped, tag = 'internal scratch']
  #allocation2 [shape = 'f32[16,128]{1,0:T(8,128)}', space=vmem, size = 0x2000, scoped, tag = 'scratch operand']
  #allocation3 [shape = 'f32[16,128]{1,0:T(8,128)}', space=vmem, size = 0x2000, scoped, tag = 'scratch operand']
  #allocation4 [shape = 'f32[16,128]{1,0:T(8,128)}', space=vmem, size = 0x2000, scoped, tag = 'scratch operand']
  %s0 = inlined_call_operand.hbm [shape: f32[4,16,128], index: 0, kind: input, shape index: {}]
  %s1 = inlined_call_operand.hbm [shape: f32[16,16], index: 1, kind: input, shape index: {}]
  %s2 = inlined_call_operand.hbm [shape: f32[3,128,128], index: 2, kind: input, shape index: {}]
  %s3 = inlined_call_operand.vmem [shape: f32[1,128], index: 3, kind: input, shape index: {}]
  %s4 = inlined_call_operand.vmem [shape: f32[1,128], index: 4, kind: input, shape index: {}]
  %s5 = inlined_call_operand.vmem [shape: f32[1,128], index: 5, kind: input, shape index: {}]
  %s6 = inlined_call_operand.hbm [shape: f32[128,128], index: 6, kind: input, shape index: {}]
  %s7 = inlined_call_operand.hbm [shape: f32[16,128], index: 7, kind: output, shape index: {}]
  %s8 = sld [smem:[#allocation0]]
  $region97: #{tpu_custom_call.1} parent=0
    _
  %s10 = ssub.s32 1, %s8
  %s11 = scalar_select 0, %s10, %s8
  $region1: #{tpu_custom_call.1} parent=0
    #allocation5 [shape = 'u8[32768]{0}', space=vmem, size = 0x8000, scoped, tag = 'input window, operand 0, single buffered']
    #allocation6 [shape = 's32[2]{0}', space=sflag, size = 0x8, scoped, tag = 'scoped memory for tpu_custom_call.1']
    #allocation7 [shape = 's32[2]{0}', space=sflag, size = 0x8, scoped, tag = 'scoped memory for tpu_custom_call.1']
    #allocation8 [shape = 'u8[8192]{0}', space=vmem, size = 0x2000, scoped, tag = 'input window, operand 1, single buffered']
    #allocation9 [shape = 's32[1]{0}', space=sflag, size = 0x4, scoped, tag = 'scoped memory for tpu_custom_call.1']
    #allocation10 [shape = 'u8[131072]{0}', space=vmem, size = 0x20000, scoped, tag = 'input window, operand 2']
    #allocation11 [shape = 'u8[65536]{0}', space=vmem, size = 0x10000, scoped, tag = 'input window, operand 6, single buffered']
    #allocation12 [shape = 'u8[8192]{0}', space=vmem, size = 0x2000, scoped, tag = 'output window, operand 0, single buffered']
    %12 = vsyncpa [#allocation6], 0
    %13 = vsyncpa [#allocation9], 0
    %14 = vsyncpa [#allocation7], 0
    loop: start=0, step=1, limit=5
    $region2: #{tpu_custom_call.1} parent=1 // loop_pre_header
      _
    $region3: #{tpu_custom_call.1} parent=1 // loop_header
      %s16 = sphi 0, %s20
      %p17 = scmp.ge.s32.totalorder %s16, 5
      %s24 = sphi 0, %s24
      %s26 = sphi 0, %s24
      %s27 = sphi 0, %s26
      %s41 = sphi 0, %s27
      %s45 = sphi 0, %s45
      %s47 = sphi 0, %s45
      %s48 = sphi 0, %s47
      %s62 = sphi 0, %s48
      %s68 = sphi 0, %s70
      %s71 = sphi 0, %s68
      %s72 = sphi 0, %s71
      %s88 = sphi 0, %s72
      %s92 = sphi 0, %s92
      %s94 = sphi 0, %s92
      %s95 = sphi 0, %s94
      %s109 = sphi 0, %s95
      %s113 = sphi 0, %s113
      %s115 = sphi 0, %s113
      %s116 = sphi 0, %s115
      %s130 = sphi 0, %s116
      %s134 = sphi 0, %s134
      %s136 = sphi 0, %s134
      %s137 = sphi 0, %s136
      %s151 = sphi 0, %s137
      %s155 = sphi 0, %s155
      %s157 = sphi 0, %s155
      %s158 = sphi 0, %s157
      %s172 = sphi 0, %s158
      %s176 = sphi 0, %s176
      %s178 = sphi 0, %s176
      %s179 = sphi 0, %s178
      %s193 = sphi 0, %s179
    $region4: #{tpu_custom_call.1} parent=1 // loop_header_branch
      %19 = sbr.rel (%p17) target = $region8
    $region5: #{tpu_custom_call.1} parent=1 // loop_body
      %s21 = ssub.s32 %s16, 1
      %s22 = ssub.s32 %s16, 2
      %s23 = sadd.s32 %s16, 1
      %s25 = sadd.s32 %s24, 1
      %p28 = scmp.eq.s32.totalorder %s16, 2
      %p29 = scmp.ne.s32.totalorder %s24, %s26
      %p30 = scmp.eq.s32.totalorder %s16, 0
      %p31 = por %p29, %p30
      %p32 = scmp.ne.s32.totalorder %s24, %s26
      %p33 = scmp.eq.s32.totalorder %s21, 2
      %p34 = por %p32, %p33
      %p35 = scmp.ne.s32.totalorder %s26, %s27
      %p36 = scmp.eq.s32.totalorder %s21, 0
      %p37 = por %p35, %p36
      %p38 = scmp.ne.s32.totalorder %s26, %s27
      %p39 = scmp.eq.s32.totalorder %s22, 2
      %p40 = por %p38, %p39
      %p42 = scmp.ne.s32.totalorder %s27, %s41
      %p43 = scmp.eq.s32.totalorder %s22, 0
      %p44 = por %p42, %p43
      %s46 = sadd.s32 %s45, 1
      %p49 = scmp.eq.s32.totalorder %s16, 2
      %p50 = scmp.ne.s32.totalorder %s45, %s47
      %p51 = scmp.eq.s32.totalorder %s16, 0
      %p52 = por %p50, %p51
      %p53 = scmp.ne.s32.totalorder %s45, %s47
      %p54 = scmp.eq.s32.totalorder %s21, 2
      %p55 = por %p53, %p54
      %p56 = scmp.ne.s32.totalorder %s47, %s48
      %p57 = scmp.eq.s32.totalorder %s21, 0
      %p58 = por %p56, %p57
      %p59 = scmp.ne.s32.totalorder %s47, %s48
      %p60 = scmp.eq.s32.totalorder %s22, 2
      %p61 = por %p59, %p60
      %p63 = scmp.ne.s32.totalorder %s48, %s62
      %p64 = scmp.eq.s32.totalorder %s22, 0
      %p65 = por %p63, %p64
      %s66 = ssub.s32 %s16, %s23
      %p67 = scmp.eq.s32.totalorder %s66, 0
      %s69 = sadd.s32 %s68, 1
      %s70 = scalar_select %p67, %s68, %s69
      %p73 = pneg %p67
      %p74 = scmp.eq.s32.totalorder %s16, 2
      %p75 = por %p73, %p74
      %p76 = scmp.ne.s32.totalorder %s68, %s71
      %p77 = scmp.eq.s32.totalorder %s16, 0
      %p78 = por %p76, %p77
      %p79 = scmp.ne.s32.totalorder %s68, %s71
      %p80 = scmp.eq.s32.totalorder %s21, 2
      %p81 = por %p79, %p80
      %p82 = scmp.ne.s32.totalorder %s71, %s72
      %p83 = scmp.eq.s32.totalorder %s21, 0
      %p84 = por %p82, %p83
      %p85 = scmp.ne.s32.totalorder %s71, %s72
      %p86 = scmp.eq.s32.totalorder %s22, 2
      %p87 = por %p85, %p86
      %p89 = scmp.ne.s32.totalorder %s72, %s88
      %p90 = scmp.eq.s32.totalorder %s22, 0
      %p91 = por %p89, %p90
      %s93 = sadd.s32 %s92, 1
      %p96 = scmp.eq.s32.totalorder %s16, 2
      %p97 = scmp.ne.s32.totalorder %s92, %s94
      %p98 = scmp.eq.s32.totalorder %s16, 0
      %p99 = por %p97, %p98
      %p100 = scmp.ne.s32.totalorder %s92, %s94
      %p101 = scmp.eq.s32.totalorder %s21, 2
      %p102 = por %p100, %p101
      %p103 = scmp.ne.s32.totalorder %s94, %s95
      %p104 = scmp.eq.s32.totalorder %s21, 0
      %p105 = por %p103, %p104
      %p106 = scmp.ne.s32.totalorder %s94, %s95
      %p107 = scmp.eq.s32.totalorder %s22, 2
      %p108 = por %p106, %p107
      %p110 = scmp.ne.s32.totalorder %s95, %s109
      %p111 = scmp.eq.s32.totalorder %s22, 0
      %p112 = por %p110, %p111
      %s114 = sadd.s32 %s113, 1
      %p117 = scmp.eq.s32.totalorder %s16, 2
      %p118 = scmp.ne.s32.totalorder %s113, %s115
      %p119 = scmp.eq.s32.totalorder %s16, 0
      %p120 = por %p118, %p119
      %p121 = scmp.ne.s32.totalorder %s113, %s115
      %p122 = scmp.eq.s32.totalorder %s21, 2
      %p123 = por %p121, %p122
      %p124 = scmp.ne.s32.totalorder %s115, %s116
      %p125 = scmp.eq.s32.totalorder %s21, 0
      %p126 = por %p124, %p125
      %p127 = scmp.ne.s32.totalorder %s115, %s116
      %p128 = scmp.eq.s32.totalorder %s22, 2
      %p129 = por %p127, %p128
      %p131 = scmp.ne.s32.totalorder %s116, %s130
      %p132 = scmp.eq.s32.totalorder %s22, 0
      %p133 = por %p131, %p132
      %s135 = sadd.s32 %s134, 1
      %p138 = scmp.eq.s32.totalorder %s16, 2
      %p139 = scmp.ne.s32.totalorder %s134, %s136
      %p140 = scmp.eq.s32.totalorder %s16, 0
      %p141 = por %p139, %p140
      %p142 = scmp.ne.s32.totalorder %s134, %s136
      %p143 = scmp.eq.s32.totalorder %s21, 2
      %p144 = por %p142, %p143
      %p145 = scmp.ne.s32.totalorder %s136, %s137
      %p146 = scmp.eq.s32.totalorder %s21, 0
      %p147 = por %p145, %p146
      %p148 = scmp.ne.s32.totalorder %s136, %s137
      %p149 = scmp.eq.s32.totalorder %s22, 2
      %p150 = por %p148, %p149
      %p152 = scmp.ne.s32.totalorder %s137, %s151
      %p153 = scmp.eq.s32.totalorder %s22, 0
      %p154 = por %p152, %p153
      %s156 = sadd.s32 %s155, 1
      %p159 = scmp.eq.s32.totalorder %s16, 2
      %p160 = scmp.ne.s32.totalorder %s155, %s157
      %p161 = scmp.eq.s32.totalorder %s16, 0
      %p162 = por %p160, %p161
      %p163 = scmp.ne.s32.totalorder %s155, %s157
      %p164 = scmp.eq.s32.totalorder %s21, 2
      %p165 = por %p163, %p164
      %p166 = scmp.ne.s32.totalorder %s157, %s158
      %p167 = scmp.eq.s32.totalorder %s21, 0
      %p168 = por %p166, %p167
      %p169 = scmp.ne.s32.totalorder %s157, %s158
      %p170 = scmp.eq.s32.totalorder %s22, 2
      %p171 = por %p169, %p170
      %p173 = scmp.ne.s32.totalorder %s158, %s172
      %p174 = scmp.eq.s32.totalorder %s22, 0
      %p175 = por %p173, %p174
      %s177 = sadd.s32 %s176, 1
      %p180 = scmp.eq.s32.totalorder %s16, 2
      %p181 = scmp.ne.s32.totalorder %s176, %s178
      %p182 = scmp.eq.s32.totalorder %s16, 0
      %p183 = por %p181, %p182
      %p184 = scmp.ne.s32.totalorder %s176, %s178
      %p185 = scmp.eq.s32.totalorder %s21, 2
      %p186 = por %p184, %p185
      %p187 = scmp.ne.s32.totalorder %s178, %s179
      %p188 = scmp.eq.s32.totalorder %s21, 0
      %p189 = por %p187, %p188
      %p190 = scmp.ne.s32.totalorder %s178, %s179
      %p191 = scmp.eq.s32.totalorder %s22, 2
      %p192 = por %p190, %p191
      %p194 = scmp.ne.s32.totalorder %s179, %s193
      %p195 = scmp.eq.s32.totalorder %s22, 0
      %p196 = por %p194, %p195
      %p197 = scmp.le.s32.totalorder 1, %s16
      %p198 = scmp.lt.s32.totalorder %s16, 4
      %p199 = pnand %p197, %p198
      %p200 = pneg %p199
      // Predicated region
      $region9: #{tpu_custom_call.1} parent=5 // pred_check
        _
      $region10: #{tpu_custom_call.1} parent=5 // pred_check_branch
        %202 = sbr.rel (%p199) target = $region12
      $region11: #{tpu_custom_call.1} parent=5 // pred_region
        %s203 = ssub.s32 %s16, 1
        // Predicated region
        $region13: #{tpu_custom_call.1} parent=11 // pred_check
          %p204 = pneg %p37
        $region14: #{tpu_custom_call.1} parent=11 // pred_check_branch
          %206 = sbr.rel (%p204) target = $region16
        $region15: #{tpu_custom_call.1} parent=11 // pred_region
          %s208 = ssub.s32 1024, 1024
          %209 = vsyncadd [#allocation6], %s208
          %s210 = sshll.u32 [#allocation5], 4
          %s211 = int_to_ptr.vmem [resolvable:$true] %s210
          %216 = dma.hbm_to_vmem [thread:$0]  %s0, 1024, %s211, [#allocation6], 128, 128, 8
        $region16: #{tpu_custom_call.1} parent=11 // pred_fallthru
          _
        // Predicated region
        $region17: #{tpu_custom_call.1} parent=11 // pred_check
          %p217 = pneg %p58
        $region18: #{tpu_custom_call.1} parent=11 // pred_check_branch
          %219 = sbr.rel (%p217) target = $region20
        $region19: #{tpu_custom_call.1} parent=11 // pred_region
          %s221 = ssub.s32 256, 256
          %222 = vsyncadd [#allocation9], %s221
          %s223 = sshll.u32 [#allocation8], 4
          %s224 = int_to_ptr.vmem [resolvable:$true] %s223
          %229 = dma.hbm_to_vmem [thread:$0]  %s1, 256, %s224, [#allocation9], 128, 128, 8
        $region20: #{tpu_custom_call.1} parent=11 // pred_fallthru
          _
        // Predicated region
        $region21: #{tpu_custom_call.1} parent=11 // pred_check
          %p230 = pneg %p105
        $region22: #{tpu_custom_call.1} parent=11 // pred_check_branch
          %232 = sbr.rel (%p230) target = $region24
        $region23: #{tpu_custom_call.1} parent=11 // pred_region
          _
        $region24: #{tpu_custom_call.1} parent=11 // pred_fallthru
          _
        // Predicated region
        $region25: #{tpu_custom_call.1} parent=11 // pred_check
          %p233 = pneg %p126
        $region26: #{tpu_custom_call.1} parent=11 // pred_check_branch
          %235 = sbr.rel (%p233) target = $region28
        $region27: #{tpu_custom_call.1} parent=11 // pred_region
          _
        $region28: #{tpu_custom_call.1} parent=11 // pred_fallthru
          _
        // Predicated region
        $region29: #{tpu_custom_call.1} parent=11 // pred_check
          %p236 = pneg %p147
        $region30: #{tpu_custom_call.1} parent=11 // pred_check_branch
          %238 = sbr.rel (%p236) target = $region32
        $region31: #{tpu_custom_call.1} parent=11 // pred_region
          _
        $region32: #{tpu_custom_call.1} parent=11 // pred_fallthru
          _
        // Predicated region
        $region33: #{tpu_custom_call.1} parent=11 // pred_check
          %p239 = pneg %p168
        $region34: #{tpu_custom_call.1} parent=11 // pred_check_branch
          %241 = sbr.rel (%p239) target = $region36
        $region35: #{tpu_custom_call.1} parent=11 // pred_region
          %s243 = ssub.s32 2048, 2048
          %244 = vsyncadd [#allocation9], %s243
          %s245 = sshll.u32 [#allocation11], 4
          %s246 = int_to_ptr.vmem [resolvable:$true] %s245
          %251 = dma.hbm_to_vmem [thread:$0]  %s6, 2048, %s246, [#allocation9], 128, 128, 8
        $region36: #{tpu_custom_call.1} parent=11 // pred_fallthru
          _
      $region12: #{tpu_custom_call.1} parent=5 // pred_fallthru
        _
      %p252 = scmp.lt.s32.totalorder %s16, 3
      // Predicated region
      $region37: #{tpu_custom_call.1} parent=5 // pred_check
        %p253 = pneg %p252
      $region38: #{tpu_custom_call.1} parent=5 // pred_check_branch
        %255 = sbr.rel (%p253) target = $region40
      $region39: #{tpu_custom_call.1} parent=5 // pred_region
        // Predicated region
        $region41: #{tpu_custom_call.1} parent=39 // pred_check
          %p256 = pneg %p78
        $region42: #{tpu_custom_call.1} parent=39 // pred_check_branch
          %258 = sbr.rel (%p256) target = $region44
        $region43: #{tpu_custom_call.1} parent=39 // pred_region
          %s259 = sand.u32 %s16, 1
          %s260 = scalar_lea.sflag [#allocation6], %s259
          %s261 = sand.u32 %s68, 1
          %s262 = smul.addr %s261, 128
          %s263 = scalar_lea.vmem [#allocation10], %s262
          %s265 = ssub.s32 2048, 2048
          %266 = vsyncadd %s260, %s265
          %s267 = smul.addr %s16, 16
          %s268 = smul.addr %s267, 128
          %s269 = scalar_lea.hbm %s2, %s268
          %s270 = sshll.u32 %s263, 4
          %s271 = int_to_ptr.vmem [resolvable:$true] %s270
          %276 = dma.hbm_to_vmem [thread:$0]  %s269, 2048, %s271, %s260, 128, 128, 8
        $region44: #{tpu_custom_call.1} parent=39 // pred_fallthru
          _
      $region40: #{tpu_custom_call.1} parent=5 // pred_fallthru
        _
      %p277 = scmp.le.s32.totalorder 1, %s16
      %p278 = scmp.lt.s32.totalorder %s16, 4
      %p279 = pnand %p277, %p278
      %p280 = pneg %p279
      // Predicated region
      $region45: #{tpu_custom_call.1} parent=5 // pred_check
        _
      $region46: #{tpu_custom_call.1} parent=5 // pred_check_branch
        %282 = sbr.rel (%p279) target = $region48
      $region47: #{tpu_custom_call.1} parent=5 // pred_region
        %s283 = ssub.s32 %s16, 1
        // Predicated region
        $region49: #{tpu_custom_call.1} parent=47 // pred_check
          %p284 = pneg %p37
        $region50: #{tpu_custom_call.1} parent=47 // pred_check_branch
          %286 = sbr.rel (%p284) target = $region52
        $region51: #{tpu_custom_call.1} parent=47 // pred_region
          %287 = dma.done [#allocation6], 1024
        $region52: #{tpu_custom_call.1} parent=47 // pred_fallthru
          _
        // Predicated region
        $region53: #{tpu_custom_call.1} parent=47 // pred_check
          %p288 = pneg %p58
        $region54: #{tpu_custom_call.1} parent=47 // pred_check_branch
          %290 = sbr.rel (%p288) target = $region56
        $region55: #{tpu_custom_call.1} parent=47 // pred_region
          %291 = dma.done [#allocation9], 256
        $region56: #{tpu_custom_call.1} parent=47 // pred_fallthru
          _
        %s292 = sand.u32 %s21, 1
        %s293 = scalar_lea.sflag [#allocation6], %s292
        %s294 = sand.u32 %s71, 1
        %s295 = smul.addr %s294, 128
        %s296 = scalar_lea.vmem [#allocation10], %s295
        // Predicated region
        $region57: #{tpu_custom_call.1} parent=47 // pred_check
          %p297 = pneg %p84
        $region58: #{tpu_custom_call.1} parent=47 // pred_check_branch
          %299 = sbr.rel (%p297) target = $region60
        $region59: #{tpu_custom_call.1} parent=47 // pred_region
          %300 = dma.done %s293, 2048
        $region60: #{tpu_custom_call.1} parent=47 // pred_fallthru
          _
        // Predicated region
        $region61: #{tpu_custom_call.1} parent=47 // pred_check
          %p301 = pneg %p168
        $region62: #{tpu_custom_call.1} parent=47 // pred_check_branch
          %303 = sbr.rel (%p301) target = $region64
        $region63: #{tpu_custom_call.1} parent=47 // pred_region
          %304 = dma.done [#allocation9], 2048
        $region64: #{tpu_custom_call.1} parent=47 // pred_fallthru
          _
        %p305 = pneg %p37
        %p306 = pneg %p34
        %p307 = pneg %p58
        %p308 = pneg %p55
        %s309 = sand.u32 %s21, 1
        %s310 = scalar_lea.sflag [#allocation6], %s309
        %s311 = sand.u32 %s71, 1
        %s312 = smul.addr %s311, 128
        %s313 = scalar_lea.vmem [#allocation10], %s312
        %p314 = pneg %p84
        %p315 = pneg %p81
        %p316 = pneg %p105
        %p317 = pneg %p102
        %p318 = pneg %p126
        %p319 = pneg %p123
        %p320 = pneg %p147
        %p321 = pneg %p144
        %p322 = pneg %p168
        %p323 = pneg %p165
        %p324 = pneg %p189
        %p325 = pneg %p186
        %v326 = vld [vmem:[%s296] sm:$0xff]
        %v327 = vld [vmem:[%s296 + $0x8] sm:$0xff]
        %v328 = vld [vmem:[%s296 + $0x10] sm:$0xff]
        %v329 = vld [vmem:[%s296 + $0x18] sm:$0xff]
        %v330 = vld [vmem:[%s296 + $0x20] sm:$0xff]
        %v331 = vld [vmem:[%s296 + $0x28] sm:$0xff]
        %v332 = vld [vmem:[%s296 + $0x30] sm:$0xff]
        %v333 = vld [vmem:[%s296 + $0x38] sm:$0xff]
        %v334 = vld [vmem:[%s296 + $0x40] sm:$0xff]
        %v335 = vld [vmem:[%s296 + $0x48] sm:$0xff]
        %v336 = vld [vmem:[%s296 + $0x50] sm:$0xff]
        %v337 = vld [vmem:[%s296 + $0x58] sm:$0xff]
        %v338 = vld [vmem:[%s296 + $0x60] sm:$0xff]
        %v339 = vld [vmem:[%s296 + $0x68] sm:$0xff]
        %v340 = vld [vmem:[%s296 + $0x70] sm:$0xff]
        %v341 = vld [vmem:[%s296 + $0x78] sm:$0xff]
        %p342 = scmp.eq.s32.totalorder %s21, 0
        // Predicated region
        $region65: #{tpu_custom_call.1} parent=47 // pred_check
          %p343 = pneg %p342
        $region66: #{tpu_custom_call.1} parent=47 // pred_check_branch
          %345 = sbr.rel (%p343) target = $region68
        $region67: #{tpu_custom_call.1} parent=47 // pred_region
          %v346 = vld [vmem:[#allocation5] sm:$0xff]
          %v347 = vld [vmem:[#allocation5 + $0x8] sm:$0xff]
          %s348 = scalar_lea.vmem [#allocation5], 16
          %v349 = vld [vmem:[%s348] sm:$0xff]
          %v350 = vld [vmem:[%s348 + $0x8] sm:$0xff]
          %s351 = scalar_lea.vmem [#allocation5], 32
          %v352 = vld [vmem:[%s351] sm:$0xff]
          %v353 = vld [vmem:[%s351 + $0x8] sm:$0xff]
          %s354 = scalar_lea.vmem [#allocation5], 48
          %v355 = vld [vmem:[%s354] sm:$0xff]
          %v356 = vld [vmem:[%s354 + $0x8] sm:$0xff]
          %v357 = vmax.f32 %v346, %v349
          %v358 = vmax.f32 %v347, %v350
          %v359 = vmax.f32 %v352, %v355
          %v360 = vmax.f32 %v353, %v356
          %v361 = vmax.f32 %v357, %v359
          %v362 = vmax.f32 %v358, %v360
          %363 = vst [vmem:[#allocation2] sm:$0xff] %v361
          %364 = vst [vmem:[#allocation2 + $0x8] sm:$0xff] %v362
          %365 = vmatprep.subr.mxu0 0.0
          %366 = vmatpush1.msra.mxu0 %v326
          %367 = vmatprep.subr.mxu0 0.0
          %368 = vmatpush1.msra.mxu0 %v327
          %369 = vmatprep.subr.mxu0 0.0
          %370 = vmatpush1.msra.mxu0 %v328
          %371 = vmatprep.subr.mxu0 0.0
          %372 = vmatpush1.msra.mxu0 %v329
          %373 = vmatprep.subr.mxu0 0.0
          %374 = vmatpush1.msra.mxu0 %v330
          %375 = vmatprep.subr.mxu0 0.0
          %376 = vmatpush1.msra.mxu0 %v331
          %377 = vmatprep.subr.mxu0 0.0
          %378 = vmatpush1.msra.mxu0 %v332
          %379 = vmatprep.subr.mxu0 0.0
          %380 = vmatpush1.msra.mxu0 %v333
          %381 = vmatprep.subr.mxu0 0.0
          %382 = vmatpush1.msra.mxu0 %v334
          %383 = vmatprep.subr.mxu0 0.0
          %384 = vmatpush1.msra.mxu0 %v335
          %385 = vmatprep.subr.mxu0 0.0
          %386 = vmatpush1.msra.mxu0 %v336
          %387 = vmatprep.subr.mxu0 0.0
          %388 = vmatpush1.msra.mxu0 %v337
          %389 = vmatprep.subr.mxu0 0.0
          %390 = vmatpush1.msra.mxu0 %v338
          %391 = vmatprep.subr.mxu0 0.0
          %392 = vmatpush1.msra.mxu0 %v339
          %393 = vmatprep.subr.mxu0 0.0
          %394 = vmatpush1.msra.mxu0 %v340
          %395 = vmatprep.subr.mxu0 0.0
          %396 = vmatpush1.msra.mxu0 %v341
          %397 = vmatprep.subr.mxu0 0.0
          %398 = vmatpush1.msra.mxu0 0.0
          %399 = vmatprep.subr.mxu0 0.0
          %400 = vmatpush1.msra.mxu0 0.0
          %401 = vmatprep.subr.mxu0 0.0
          %402 = vmatpush1.msra.mxu0 0.0
          %403 = vmatprep.subr.mxu0 0.0
          %404 = vmatpush1.msra.mxu0 0.0
          %405 = vmatprep.subr.mxu0 0.0
          %406 = vmatpush1.msra.mxu0 0.0
          %407 = vmatprep.subr.mxu0 0.0
          %408 = vmatpush1.msra.mxu0 0.0
          %409 = vmatprep.subr.mxu0 0.0
          %410 = vmatpush1.msra.mxu0 0.0
          %411 = vmatprep.subr.mxu0 0.0
          %412 = vmatpush1.msra.mxu0 0.0
          %413 = vmatprep.subr.mxu0 0.0
          %414 = vmatpush1.msra.mxu0 0.0
          %415 = vmatprep.subr.mxu0 0.0
          %416 = vmatpush1.msra.mxu0 0.0
          %417 = vmatprep.subr.mxu0 0.0
          %418 = vmatpush1.msra.mxu0 0.0
          %419 = vmatprep.subr.mxu0 0.0
          %420 = vmatpush1.msra.mxu0 0.0
          %421 = vmatprep.subr.mxu0 0.0
          %422 = vmatpush1.msra.mxu0 0.0
          %423 = vmatprep.subr.mxu0 0.0
          %424 = vmatpush1.msra.mxu0 0.0
          %425 = vmatprep.subr.mxu0 0.0
          %426 = vmatpush1.msra.mxu0 0.0
          %427 = vmatprep.subr.mxu0 0.0
          %428 = vmatpush1.msra.mxu0 0.0
          %429 = vmatprep.mubr.f32.mxu0 0.0
          %430 = vmatmul.mubr.f32.gmra.mrb[0].mxu0 %v361
          %v431 = vpop.f32.mrb[0].mxu0
          %v432 = vadd.f32 0.0, %v431
          %v433 = vpop.f32.mrb[0].mxu0
          %434 = vmatprep.mubr.f32.mxu0 0.0
          %435 = vmatmul.mubr.f32.gmra.mrb[0].mxu0 %v362
          %v436 = vpop.f32.mrb[0].mxu0
          %v437 = vadd.f32 0.0, %v436
          %v438 = vpop.f32.mrb[0].mxu0
          %439 = vdwg.mxu0
          %440 = vst [vmem:[#allocation4] sm:$0xff] %v432
          %441 = vst [vmem:[#allocation4 + $0x8] sm:$0xff] %v437
        $region68: #{tpu_custom_call.1} parent=47 // pred_fallthru
          _
        %p442 = scmp.eq.s32.totalorder %s21, 1
        // Predicated region
        $region69: #{tpu_custom_call.1} parent=47 // pred_check
          %p443 = pneg %p442
        $region70: #{tpu_custom_call.1} parent=47 // pred_check_branch
          %445 = sbr.rel (%p443) target = $region72
        $region71: #{tpu_custom_call.1} parent=47 // pred_region
          %v446 = vld [vmem:[#allocation8] sm:$0xff]
          %v447 = vld [vmem:[#allocation8 + $0x8] sm:$0xff]
          %v448 = vld [vmem:[#allocation2] sm:$0xff]
          %v449 = vld [vmem:[#allocation2 + $0x8] sm:$0xff]
          %vm450 = vcmask 130048
          %v452 = vsel %vm450, %v446, 0
          %v455 = vsel %vm450, %v447, 0
          %457 = vmatprep.subr.mxu0 0.0
          %458 = vmatpush1.msra.mxu0 %v448
          %459 = vmatprep.subr.mxu0 0.0
          %460 = vmatpush1.msra.mxu0 %v449
          %461 = vmatprep.subr.mxu0 0.0
          %462 = vmatpush1.msra.mxu0 0.0
          %463 = vmatprep.subr.mxu0 0.0
          %464 = vmatpush1.msra.mxu0 0.0
          %465 = vmatprep.subr.mxu0 0.0
          %466 = vmatpush1.msra.mxu0 0.0
          %467 = vmatprep.subr.mxu0 0.0
          %468 = vmatpush1.msra.mxu0 0.0
          %469 = vmatprep.subr.mxu0 0.0
          %470 = vmatpush1.msra.mxu0 0.0
          %471 = vmatprep.subr.mxu0 0.0
          %472 = vmatpush1.msra.mxu0 0.0
          %473 = vmatprep.subr.mxu0 0.0
          %474 = vmatpush1.msra.mxu0 0.0
          %475 = vmatprep.subr.mxu0 0.0
          %476 = vmatpush1.msra.mxu0 0.0
          %477 = vmatprep.subr.mxu0 0.0
          %478 = vmatpush1.msra.mxu0 0.0
          %479 = vmatprep.subr.mxu0 0.0
          %480 = vmatpush1.msra.mxu0 0.0
          %481 = vmatprep.subr.mxu0 0.0
          %482 = vmatpush1.msra.mxu0 0.0
          %483 = vmatprep.subr.mxu0 0.0
          %484 = vmatpush1.msra.mxu0 0.0
          %485 = vmatprep.subr.mxu0 0.0
          %486 = vmatpush1.msra.mxu0 0.0
          %487 = vmatprep.subr.mxu0 0.0
          %488 = vmatpush1.msra.mxu0 0.0
          %489 = vmatprep.subr.mxu0 0.0
          %490 = vmatpush1.msra.mxu0 0.0
          %491 = vmatprep.subr.mxu0 0.0
          %492 = vmatpush1.msra.mxu0 0.0
          %493 = vmatprep.subr.mxu0 0.0
          %494 = vmatpush1.msra.mxu0 0.0
          %495 = vmatprep.subr.mxu0 0.0
          %496 = vmatpush1.msra.mxu0 0.0
          %497 = vmatprep.subr.mxu0 0.0
          %498 = vmatpush1.msra.mxu0 0.0
          %499 = vmatprep.subr.mxu0 0.0
          %500 = vmatpush1.msra.mxu0 0.0
          %501 = vmatprep.subr.mxu0 0.0
          %502 = vmatpush1.msra.mxu0 0.0
          %503 = vmatprep.subr.mxu0 0.0
          %504 = vmatpush1.msra.mxu0 0.0
          %505 = vmatprep.subr.mxu0 0.0
          %506 = vmatpush1.msra.mxu0 0.0
          %507 = vmatprep.subr.mxu0 0.0
          %508 = vmatpush1.msra.mxu0 0.0
          %509 = vmatprep.subr.mxu0 0.0
          %510 = vmatpush1.msra.mxu0 0.0
          %511 = vmatprep.subr.mxu0 0.0
          %512 = vmatpush1.msra.mxu0 0.0
          %513 = vmatprep.subr.mxu0 0.0
          %514 = vmatpush1.msra.mxu0 0.0
          %515 = vmatprep.subr.mxu0 0.0
          %516 = vmatpush1.msra.mxu0 0.0
          %517 = vmatprep.subr.mxu0 0.0
          %518 = vmatpush1.msra.mxu0 0.0
          %519 = vmatprep.subr.mxu0 0.0
          %520 = vmatpush1.msra.mxu0 0.0
          %521 = vmatprep.mubr.f32.mxu0 0.0
          %522 = vmatmul.mubr.f32.gmra.mrb[0].mxu0 %v452
          %v523 = vpop.f32.mrb[0].mxu0
          %v524 = vadd.f32 0.0, %v523
          %v525 = vpop.f32.mrb[0].mxu0
          %526 = vmatprep.mubr.f32.mxu0 0.0
          %527 = vmatmul.mubr.f32.gmra.mrb[0].mxu0 %v455
          %v528 = vpop.f32.mrb[0].mxu0
          %v529 = vadd.f32 0.0, %v528
          %v530 = vpop.f32.mrb[0].mxu0
          %531 = vdwg.mxu0
          %532 = vst [vmem:[#allocation3] sm:$0xff] %v524
          %533 = vst [vmem:[#allocation3 + $0x8] sm:$0xff] %v529
          %v534 = vld [vmem:[#allocation4] sm:$0xff]
          %v535 = vld [vmem:[#allocation4 + $0x8] sm:$0xff]
          %536 = vmatprep.subr.mxu0 0.0
          %537 = vmatpush1.msra.mxu0 %v326
          %538 = vmatprep.subr.mxu0 0.0
          %539 = vmatpush1.msra.mxu0 %v327
          %540 = vmatprep.subr.mxu0 0.0
          %541 = vmatpush1.msra.mxu0 %v328
          %542 = vmatprep.subr.mxu0 0.0
          %543 = vmatpush1.msra.mxu0 %v329
          %544 = vmatprep.subr.mxu0 0.0
          %545 = vmatpush1.msra.mxu0 %v330
          %546 = vmatprep.subr.mxu0 0.0
          %547 = vmatpush1.msra.mxu0 %v331
          %548 = vmatprep.subr.mxu0 0.0
          %549 = vmatpush1.msra.mxu0 %v332
          %550 = vmatprep.subr.mxu0 0.0
          %551 = vmatpush1.msra.mxu0 %v333
          %552 = vmatprep.subr.mxu0 0.0
          %553 = vmatpush1.msra.mxu0 %v334
          %554 = vmatprep.subr.mxu0 0.0
          %555 = vmatpush1.msra.mxu0 %v335
          %556 = vmatprep.subr.mxu0 0.0
          %557 = vmatpush1.msra.mxu0 %v336
          %558 = vmatprep.subr.mxu0 0.0
          %559 = vmatpush1.msra.mxu0 %v337
          %560 = vmatprep.subr.mxu0 0.0
          %561 = vmatpush1.msra.mxu0 %v338
          %562 = vmatprep.subr.mxu0 0.0
          %563 = vmatpush1.msra.mxu0 %v339
          %564 = vmatprep.subr.mxu0 0.0
          %565 = vmatpush1.msra.mxu0 %v340
          %566 = vmatprep.subr.mxu0 0.0
          %567 = vmatpush1.msra.mxu0 %v341
          %568 = vmatprep.subr.mxu0 0.0
          %569 = vmatpush1.msra.mxu0 0.0
          %570 = vmatprep.subr.mxu0 0.0
          %571 = vmatpush1.msra.mxu0 0.0
          %572 = vmatprep.subr.mxu0 0.0
          %573 = vmatpush1.msra.mxu0 0.0
          %574 = vmatprep.subr.mxu0 0.0
          %575 = vmatpush1.msra.mxu0 0.0
          %576 = vmatprep.subr.mxu0 0.0
          %577 = vmatpush1.msra.mxu0 0.0
          %578 = vmatprep.subr.mxu0 0.0
          %579 = vmatpush1.msra.mxu0 0.0
          %580 = vmatprep.subr.mxu0 0.0
          %581 = vmatpush1.msra.mxu0 0.0
          %582 = vmatprep.subr.mxu0 0.0
          %583 = vmatpush1.msra.mxu0 0.0
          %584 = vmatprep.subr.mxu0 0.0
          %585 = vmatpush1.msra.mxu0 0.0
          %586 = vmatprep.subr.mxu0 0.0
          %587 = vmatpush1.msra.mxu0 0.0
          %588 = vmatprep.subr.mxu0 0.0
          %589 = vmatpush1.msra.mxu0 0.0
          %590 = vmatprep.subr.mxu0 0.0
          %591 = vmatpush1.msra.mxu0 0.0
          %592 = vmatprep.subr.mxu0 0.0
          %593 = vmatpush1.msra.mxu0 0.0
          %594 = vmatprep.subr.mxu0 0.0
          %595 = vmatpush1.msra.mxu0 0.0
          %596 = vmatprep.subr.mxu0 0.0
          %597 = vmatpush1.msra.mxu0 0.0
          %598 = vmatprep.subr.mxu0 0.0
          %599 = vmatpush1.msra.mxu0 0.0
          %600 = vmatprep.mubr.f32.mxu0 0.0
          %601 = vmatmul.mubr.f32.gmra.mrb[0].mxu0 %v524
          %v602 = vpop.f32.mrb[0].mxu0
          %v603 = vadd.f32 0.0, %v602
          %v604 = vpop.f32.mrb[0].mxu0
          %605 = vmatprep.mubr.f32.mxu0 0.0
          %606 = vmatmul.mubr.f32.gmra.mrb[0].mxu0 %v529
          %v607 = vpop.f32.mrb[0].mxu0
          %v608 = vadd.f32 0.0, %v607
          %v609 = vpop.f32.mrb[0].mxu0
          %610 = vdwg.mxu0
          %v611 = vadd.f32 %v534, %v603
          %v612 = vadd.f32 %v535, %v608
          %613 = vst [vmem:[#allocation4] sm:$0xff] %v611
          %614 = vst [vmem:[#allocation4 + $0x8] sm:$0xff] %v612
        $region72: #{tpu_custom_call.1} parent=47 // pred_fallthru
          _
        %p615 = scmp.ge.s32.totalorder %s21, 2
        %p616 = scmp.lt.s32.totalorder %s21, 0
        %s617 = ssub.s32 0, %s21
        %s618 = scalar_select %p616, %s617, %s21
        %s619 = sand.u32 %s618, 1
        %s620 = ssub.s32 0, %s619
        %s621 = scalar_select %p616, %s620, %s619
        %p622 = scmp.ne.s32.totalorder %s621, 0
        %p623 = scmp.lt.s32.totalorder %s621, 0
        %p624 = pnand %p623, %p622
        %p625 = pneg %p624
        %s626 = sadd.s32 %s621, 2
        %s627 = scalar_select %p625, %s626, %s621
        %p628 = scmp.eq.s32.totalorder %s627, 0
        %p629 = pnand %p615, %p628
        %p630 = pneg %p629
        // Predicated region
        $region73: #{tpu_custom_call.1} parent=47 // pred_check
          _
        $region74: #{tpu_custom_call.1} parent=47 // pred_check_branch
          %632 = sbr.rel (%p629) target = $region76
        $region75: #{tpu_custom_call.1} parent=47 // pred_region
          %v633 = vld [vmem:[#allocation8] sm:$0xff]
          %v634 = vld [vmem:[#allocation8 + $0x8] sm:$0xff]
          %v635 = vld [vmem:[#allocation3] sm:$0xff]
          %v636 = vld [vmem:[#allocation3 + $0x8] sm:$0xff]
          %vm637 = vcmask 130048
          %v639 = vsel %vm637, %v633, 0
          %v642 = vsel %vm637, %v634, 0
          %644 = vmatprep.subr.mxu0 0.0
          %645 = vmatpush1.msra.mxu0 %v635
          %646 = vmatprep.subr.mxu0 0.0
          %647 = vmatpush1.msra.mxu0 %v636
          %648 = vmatprep.subr.mxu0 0.0
          %649 = vmatpush1.msra.mxu0 0.0
          %650 = vmatprep.subr.mxu0 0.0
          %651 = vmatpush1.msra.mxu0 0.0
          %652 = vmatprep.subr.mxu0 0.0
          %653 = vmatpush1.msra.mxu0 0.0
          %654 = vmatprep.subr.mxu0 0.0
          %655 = vmatpush1.msra.mxu0 0.0
          %656 = vmatprep.subr.mxu0 0.0
          %657 = vmatpush1.msra.mxu0 0.0
          %658 = vmatprep.subr.mxu0 0.0
          %659 = vmatpush1.msra.mxu0 0.0
          %660 = vmatprep.subr.mxu0 0.0
          %661 = vmatpush1.msra.mxu0 0.0
          %662 = vmatprep.subr.mxu0 0.0
          %663 = vmatpush1.msra.mxu0 0.0
          %664 = vmatprep.subr.mxu0 0.0
          %665 = vmatpush1.msra.mxu0 0.0
          %666 = vmatprep.subr.mxu0 0.0
          %667 = vmatpush1.msra.mxu0 0.0
          %668 = vmatprep.subr.mxu0 0.0
          %669 = vmatpush1.msra.mxu0 0.0
          %670 = vmatprep.subr.mxu0 0.0
          %671 = vmatpush1.msra.mxu0 0.0
          %672 = vmatprep.subr.mxu0 0.0
          %673 = vmatpush1.msra.mxu0 0.0
          %674 = vmatprep.subr.mxu0 0.0
          %675 = vmatpush1.msra.mxu0 0.0
          %676 = vmatprep.subr.mxu0 0.0
          %677 = vmatpush1.msra.mxu0 0.0
          %678 = vmatprep.subr.mxu0 0.0
          %679 = vmatpush1.msra.mxu0 0.0
          %680 = vmatprep.subr.mxu0 0.0
          %681 = vmatpush1.msra.mxu0 0.0
          %682 = vmatprep.subr.mxu0 0.0
          %683 = vmatpush1.msra.mxu0 0.0
          %684 = vmatprep.subr.mxu0 0.0
          %685 = vmatpush1.msra.mxu0 0.0
          %686 = vmatprep.subr.mxu0 0.0
          %687 = vmatpush1.msra.mxu0 0.0
          %688 = vmatprep.subr.mxu0 0.0
          %689 = vmatpush1.msra.mxu0 0.0
          %690 = vmatprep.subr.mxu0 0.0
          %691 = vmatpush1.msra.mxu0 0.0
          %692 = vmatprep.subr.mxu0 0.0
          %693 = vmatpush1.msra.mxu0 0.0
          %694 = vmatprep.subr.mxu0 0.0
          %695 = vmatpush1.msra.mxu0 0.0
          %696 = vmatprep.subr.mxu0 0.0
          %697 = vmatpush1.msra.mxu0 0.0
          %698 = vmatprep.subr.mxu0 0.0
          %699 = vmatpush1.msra.mxu0 0.0
          %700 = vmatprep.subr.mxu0 0.0
          %701 = vmatpush1.msra.mxu0 0.0
          %702 = vmatprep.subr.mxu0 0.0
          %703 = vmatpush1.msra.mxu0 0.0
          %704 = vmatprep.subr.mxu0 0.0
          %705 = vmatpush1.msra.mxu0 0.0
          %706 = vmatprep.subr.mxu0 0.0
          %707 = vmatpush1.msra.mxu0 0.0
          %708 = vmatprep.mubr.f32.mxu0 0.0
          %709 = vmatmul.mubr.f32.gmra.mrb[0].mxu0 %v639
          %v710 = vpop.f32.mrb[0].mxu0
          %v711 = vadd.f32 0.0, %v710
          %v712 = vpop.f32.mrb[0].mxu0
          %713 = vmatprep.mubr.f32.mxu0 0.0
          %714 = vmatmul.mubr.f32.gmra.mrb[0].mxu0 %v642
          %v715 = vpop.f32.mrb[0].mxu0
          %v716 = vadd.f32 0.0, %v715
          %v717 = vpop.f32.mrb[0].mxu0
          %718 = vdwg.mxu0
          %v719 = vmul.f32 %v711, 2.0
          %v720 = vmul.f32 %v716, 2.0
          %v721 = vld [vmem:[#allocation2] sm:$0xff]
          %v722 = vld [vmem:[#allocation2 + $0x8] sm:$0xff]
          %v723 = vsub.f32 %v719, %v721
          %v724 = vsub.f32 %v720, %v722
          %725 = vst [vmem:[#allocation2] sm:$0xff] %v723
          %726 = vst [vmem:[#allocation2 + $0x8] sm:$0xff] %v724
          %v727 = vld [vmem:[#allocation4] sm:$0xff]
          %v728 = vld [vmem:[#allocation4 + $0x8] sm:$0xff]
          %729 = vmatprep.subr.mxu0 0.0
          %730 = vmatpush1.msra.mxu0 %v326
          %731 = vmatprep.subr.mxu0 0.0
          %732 = vmatpush1.msra.mxu0 %v327
          %733 = vmatprep.subr.mxu0 0.0
          %734 = vmatpush1.msra.mxu0 %v328
          %735 = vmatprep.subr.mxu0 0.0
          %736 = vmatpush1.msra.mxu0 %v329
          %737 = vmatprep.subr.mxu0 0.0
          %738 = vmatpush1.msra.mxu0 %v330
          %739 = vmatprep.subr.mxu0 0.0
          %740 = vmatpush1.msra.mxu0 %v331
          %741 = vmatprep.subr.mxu0 0.0
          %742 = vmatpush1.msra.mxu0 %v332
          %743 = vmatprep.subr.mxu0 0.0
          %744 = vmatpush1.msra.mxu0 %v333
          %745 = vmatprep.subr.mxu0 0.0
          %746 = vmatpush1.msra.mxu0 %v334
          %747 = vmatprep.subr.mxu0 0.0
          %748 = vmatpush1.msra.mxu0 %v335
          %749 = vmatprep.subr.mxu0 0.0
          %750 = vmatpush1.msra.mxu0 %v336
          %751 = vmatprep.subr.mxu0 0.0
          %752 = vmatpush1.msra.mxu0 %v337
          %753 = vmatprep.subr.mxu0 0.0
          %754 = vmatpush1.msra.mxu0 %v338
          %755 = vmatprep.subr.mxu0 0.0
          %756 = vmatpush1.msra.mxu0 %v339
          %757 = vmatprep.subr.mxu0 0.0
          %758 = vmatpush1.msra.mxu0 %v340
          %759 = vmatprep.subr.mxu0 0.0
          %760 = vmatpush1.msra.mxu0 %v341
          %761 = vmatprep.subr.mxu0 0.0
          %762 = vmatpush1.msra.mxu0 0.0
          %763 = vmatprep.subr.mxu0 0.0
          %764 = vmatpush1.msra.mxu0 0.0
          %765 = vmatprep.subr.mxu0 0.0
          %766 = vmatpush1.msra.mxu0 0.0
          %767 = vmatprep.subr.mxu0 0.0
          %768 = vmatpush1.msra.mxu0 0.0
          %769 = vmatprep.subr.mxu0 0.0
          %770 = vmatpush1.msra.mxu0 0.0
          %771 = vmatprep.subr.mxu0 0.0
          %772 = vmatpush1.msra.mxu0 0.0
          %773 = vmatprep.subr.mxu0 0.0
          %774 = vmatpush1.msra.mxu0 0.0
          %775 = vmatprep.subr.mxu0 0.0
          %776 = vmatpush1.msra.mxu0 0.0
          %777 = vmatprep.subr.mxu0 0.0
          %778 = vmatpush1.msra.mxu0 0.0
          %779 = vmatprep.subr.mxu0 0.0
          %780 = vmatpush1.msra.mxu0 0.0
          %781 = vmatprep.subr.mxu0 0.0
          %782 = vmatpush1.msra.mxu0 0.0
          %783 = vmatprep.subr.mxu0 0.0
          %784 = vmatpush1.msra.mxu0 0.0
          %785 = vmatprep.subr.mxu0 0.0
          %786 = vmatpush1.msra.mxu0 0.0
          %787 = vmatprep.subr.mxu0 0.0
          %788 = vmatpush1.msra.mxu0 0.0
          %789 = vmatprep.subr.mxu0 0.0
          %790 = vmatpush1.msra.mxu0 0.0
          %791 = vmatprep.subr.mxu0 0.0
          %792 = vmatpush1.msra.mxu0 0.0
          %793 = vmatprep.mubr.f32.mxu0 0.0
          %794 = vmatmul.mubr.f32.gmra.mrb[0].mxu0 %v723
          %v795 = vpop.f32.mrb[0].mxu0
          %v796 = vadd.f32 0.0, %v795
          %v797 = vpop.f32.mrb[0].mxu0
          %798 = vmatprep.mubr.f32.mxu0 0.0
          %799 = vmatmul.mubr.f32.gmra.mrb[0].mxu0 %v724
          %v800 = vpop.f32.mrb[0].mxu0
          %v801 = vadd.f32 0.0, %v800
          %v802 = vpop.f32.mrb[0].mxu0
          %803 = vdwg.mxu0
          %v804 = vadd.f32 %v727, %v796
          %v805 = vadd.f32 %v728, %v801
          %806 = vst [vmem:[#allocation4] sm:$0xff] %v804
          %807 = vst [vmem:[#allocation4 + $0x8] sm:$0xff] %v805
        $region76: #{tpu_custom_call.1} parent=47 // pred_fallthru
          _
        %p808 = scmp.eq.s32.totalorder %s627, 1
        %p809 = pnand %p615, %p808
        %p810 = pneg %p809
        // Predicated region
        $region77: #{tpu_custom_call.1} parent=47 // pred_check
          _
        $region78: #{tpu_custom_call.1} parent=47 // pred_check_branch
          %812 = sbr.rel (%p809) target = $region80
        $region79: #{tpu_custom_call.1} parent=47 // pred_region
          %v813 = vld [vmem:[#allocation8] sm:$0xff]
          %v814 = vld [vmem:[#allocation8 + $0x8] sm:$0xff]
          %v815 = vld [vmem:[#allocation2] sm:$0xff]
          %v816 = vld [vmem:[#allocation2 + $0x8] sm:$0xff]
          %vm817 = vcmask 130048
          %v819 = vsel %vm817, %v813, 0
          %v822 = vsel %vm817, %v814, 0
          %824 = vmatprep.subr.mxu0 0.0
          %825 = vmatpush1.msra.mxu0 %v815
          %826 = vmatprep.subr.mxu0 0.0
          %827 = vmatpush1.msra.mxu0 %v816
          %828 = vmatprep.subr.mxu0 0.0
          %829 = vmatpush1.msra.mxu0 0.0
          %830 = vmatprep.subr.mxu0 0.0
          %831 = vmatpush1.msra.mxu0 0.0
          %832 = vmatprep.subr.mxu0 0.0
          %833 = vmatpush1.msra.mxu0 0.0
          %834 = vmatprep.subr.mxu0 0.0
          %835 = vmatpush1.msra.mxu0 0.0
          %836 = vmatprep.subr.mxu0 0.0
          %837 = vmatpush1.msra.mxu0 0.0
          %838 = vmatprep.subr.mxu0 0.0
          %839 = vmatpush1.msra.mxu0 0.0
          %840 = vmatprep.subr.mxu0 0.0
          %841 = vmatpush1.msra.mxu0 0.0
          %842 = vmatprep.subr.mxu0 0.0
          %843 = vmatpush1.msra.mxu0 0.0
          %844 = vmatprep.subr.mxu0 0.0
          %845 = vmatpush1.msra.mxu0 0.0
          %846 = vmatprep.subr.mxu0 0.0
          %847 = vmatpush1.msra.mxu0 0.0
          %848 = vmatprep.subr.mxu0 0.0
          %849 = vmatpush1.msra.mxu0 0.0
          %850 = vmatprep.subr.mxu0 0.0
          %851 = vmatpush1.msra.mxu0 0.0
          %852 = vmatprep.subr.mxu0 0.0
          %853 = vmatpush1.msra.mxu0 0.0
          %854 = vmatprep.subr.mxu0 0.0
          %855 = vmatpush1.msra.mxu0 0.0
          %856 = vmatprep.subr.mxu0 0.0
          %857 = vmatpush1.msra.mxu0 0.0
          %858 = vmatprep.subr.mxu0 0.0
          %859 = vmatpush1.msra.mxu0 0.0
          %860 = vmatprep.subr.mxu0 0.0
          %861 = vmatpush1.msra.mxu0 0.0
          %862 = vmatprep.subr.mxu0 0.0
          %863 = vmatpush1.msra.mxu0 0.0
          %864 = vmatprep.subr.mxu0 0.0
          %865 = vmatpush1.msra.mxu0 0.0
          %866 = vmatprep.subr.mxu0 0.0
          %867 = vmatpush1.msra.mxu0 0.0
          %868 = vmatprep.subr.mxu0 0.0
          %869 = vmatpush1.msra.mxu0 0.0
          %870 = vmatprep.subr.mxu0 0.0
          %871 = vmatpush1.msra.mxu0 0.0
          %872 = vmatprep.subr.mxu0 0.0
          %873 = vmatpush1.msra.mxu0 0.0
          %874 = vmatprep.subr.mxu0 0.0
          %875 = vmatpush1.msra.mxu0 0.0
          %876 = vmatprep.subr.mxu0 0.0
          %877 = vmatpush1.msra.mxu0 0.0
          %878 = vmatprep.subr.mxu0 0.0
          %879 = vmatpush1.msra.mxu0 0.0
          %880 = vmatprep.subr.mxu0 0.0
          %881 = vmatpush1.msra.mxu0 0.0
          %882 = vmatprep.subr.mxu0 0.0
          %883 = vmatpush1.msra.mxu0 0.0
          %884 = vmatprep.subr.mxu0 0.0
          %885 = vmatpush1.msra.mxu0 0.0
          %886 = vmatprep.subr.mxu0 0.0
          %887 = vmatpush1.msra.mxu0 0.0
          %888 = vmatprep.mubr.f32.mxu0 0.0
          %889 = vmatmul.mubr.f32.gmra.mrb[0].mxu0 %v819
          %v890 = vpop.f32.mrb[0].mxu0
          %v891 = vadd.f32 0.0, %v890
          %v892 = vpop.f32.mrb[0].mxu0
          %893 = vmatprep.mubr.f32.mxu0 0.0
          %894 = vmatmul.mubr.f32.gmra.mrb[0].mxu0 %v822
          %v895 = vpop.f32.mrb[0].mxu0
          %v896 = vadd.f32 0.0, %v895
          %v897 = vpop.f32.mrb[0].mxu0
          %898 = vdwg.mxu0
          %v899 = vmul.f32 %v891, 2.0
          %v900 = vmul.f32 %v896, 2.0
          %v901 = vld [vmem:[#allocation3] sm:$0xff]
          %v902 = vld [vmem:[#allocation3 + $0x8] sm:$0xff]
          %v903 = vsub.f32 %v899, %v901
          %v904 = vsub.f32 %v900, %v902
          %905 = vst [vmem:[#allocation3] sm:$0xff] %v903
          %906 = vst [vmem:[#allocation3 + $0x8] sm:$0xff] %v904
          %v907 = vld [vmem:[#allocation4] sm:$0xff]
          %v908 = vld [vmem:[#allocation4 + $0x8] sm:$0xff]
          %909 = vmatprep.subr.mxu0 0.0
          %910 = vmatpush1.msra.mxu0 %v326
          %911 = vmatprep.subr.mxu0 0.0
          %912 = vmatpush1.msra.mxu0 %v327
          %913 = vmatprep.subr.mxu0 0.0
          %914 = vmatpush1.msra.mxu0 %v328
          %915 = vmatprep.subr.mxu0 0.0
          %916 = vmatpush1.msra.mxu0 %v329
          %917 = vmatprep.subr.mxu0 0.0
          %918 = vmatpush1.msra.mxu0 %v330
          %919 = vmatprep.subr.mxu0 0.0
          %920 = vmatpush1.msra.mxu0 %v331
          %921 = vmatprep.subr.mxu0 0.0
          %922 = vmatpush1.msra.mxu0 %v332
          %923 = vmatprep.subr.mxu0 0.0
          %924 = vmatpush1.msra.mxu0 %v333
          %925 = vmatprep.subr.mxu0 0.0
          %926 = vmatpush1.msra.mxu0 %v334
          %927 = vmatprep.subr.mxu0 0.0
          %928 = vmatpush1.msra.mxu0 %v335
          %929 = vmatprep.subr.mxu0 0.0
          %930 = vmatpush1.msra.mxu0 %v336
          %931 = vmatprep.subr.mxu0 0.0
          %932 = vmatpush1.msra.mxu0 %v337
          %933 = vmatprep.subr.mxu0 0.0
          %934 = vmatpush1.msra.mxu0 %v338
          %935 = vmatprep.subr.mxu0 0.0
          %936 = vmatpush1.msra.mxu0 %v339
          %937 = vmatprep.subr.mxu0 0.0
          %938 = vmatpush1.msra.mxu0 %v340
          %939 = vmatprep.subr.mxu0 0.0
          %940 = vmatpush1.msra.mxu0 %v341
          %941 = vmatprep.subr.mxu0 0.0
          %942 = vmatpush1.msra.mxu0 0.0
          %943 = vmatprep.subr.mxu0 0.0
          %944 = vmatpush1.msra.mxu0 0.0
          %945 = vmatprep.subr.mxu0 0.0
          %946 = vmatpush1.msra.mxu0 0.0
          %947 = vmatprep.subr.mxu0 0.0
          %948 = vmatpush1.msra.mxu0 0.0
          %949 = vmatprep.subr.mxu0 0.0
          %950 = vmatpush1.msra.mxu0 0.0
          %951 = vmatprep.subr.mxu0 0.0
          %952 = vmatpush1.msra.mxu0 0.0
          %953 = vmatprep.subr.mxu0 0.0
          %954 = vmatpush1.msra.mxu0 0.0
          %955 = vmatprep.subr.mxu0 0.0
          %956 = vmatpush1.msra.mxu0 0.0
          %957 = vmatprep.subr.mxu0 0.0
          %958 = vmatpush1.msra.mxu0 0.0
          %959 = vmatprep.subr.mxu0 0.0
          %960 = vmatpush1.msra.mxu0 0.0
          %961 = vmatprep.subr.mxu0 0.0
          %962 = vmatpush1.msra.mxu0 0.0
          %963 = vmatprep.subr.mxu0 0.0
          %964 = vmatpush1.msra.mxu0 0.0
          %965 = vmatprep.subr.mxu0 0.0
          %966 = vmatpush1.msra.mxu0 0.0
          %967 = vmatprep.subr.mxu0 0.0
          %968 = vmatpush1.msra.mxu0 0.0
          %969 = vmatprep.subr.mxu0 0.0
          %970 = vmatpush1.msra.mxu0 0.0
          %971 = vmatprep.subr.mxu0 0.0
          %972 = vmatpush1.msra.mxu0 0.0
          %973 = vmatprep.mubr.f32.mxu0 0.0
          %974 = vmatmul.mubr.f32.gmra.mrb[0].mxu0 %v903
          %v975 = vpop.f32.mrb[0].mxu0
          %v976 = vadd.f32 0.0, %v975
          %v977 = vpop.f32.mrb[0].mxu0
          %978 = vmatprep.mubr.f32.mxu0 0.0
          %979 = vmatmul.mubr.f32.gmra.mrb[0].mxu0 %v904
          %v980 = vpop.f32.mrb[0].mxu0
          %v981 = vadd.f32 0.0, %v980
          %v982 = vpop.f32.mrb[0].mxu0
          %983 = vdwg.mxu0
          %v984 = vadd.f32 %v907, %v976
          %v985 = vadd.f32 %v908, %v981
          %986 = vst [vmem:[#allocation4] sm:$0xff] %v984
          %987 = vst [vmem:[#allocation4 + $0x8] sm:$0xff] %v985
        $region80: #{tpu_custom_call.1} parent=47 // pred_fallthru
          _
        %p988 = scmp.eq.s32.totalorder %s21, 2
        // Predicated region
        $region81: #{tpu_custom_call.1} parent=47 // pred_check
          %p989 = pneg %p988
        $region82: #{tpu_custom_call.1} parent=47 // pred_check_branch
          %991 = sbr.rel (%p989) target = $region84
        $region83: #{tpu_custom_call.1} parent=47 // pred_region
          %v992 = vld [vmem:[#allocation4] sm:$0xff]
          %v993 = vld [vmem:[#allocation4 + $0x8] sm:$0xff]
          %v994 = vld [vmem:[%s3] sm:$0x1]
          %v996 = vlaneseq
          %v997 = vshrl.u32 %v996, 7
          %v998 = vsub.s32 0, %v997
          %v999 = vrot.slane %v994, %v998
          %v1001 = vadd.f32 %v992, %v999
          %v1002 = vadd.f32 %v993, %v999
          %v1003 = vadd.f32 %v1001, %v1002
          %v1004 = vrot.slane %v1003, 4
          %v1005 = vadd.f32 %v1003, %v1004
          %v1006 = vrot.slane %v1005, 2
          %v1007 = vadd.f32 %v1005, %v1006
          %v1008 = vrot.slane %v1007, 1
          %v1009 = vadd.f32 %v1007, %v1008
          %v1010 = vld [vmem:[#allocation11] sm:$0xff]
          %v1011 = vld [vmem:[#allocation11 + $0x8] sm:$0xff]
          %v1012 = vld [vmem:[#allocation11 + $0x10] sm:$0xff]
          %v1013 = vld [vmem:[#allocation11 + $0x18] sm:$0xff]
          %v1014 = vld [vmem:[#allocation11 + $0x20] sm:$0xff]
          %v1015 = vld [vmem:[#allocation11 + $0x28] sm:$0xff]
          %v1016 = vld [vmem:[#allocation11 + $0x30] sm:$0xff]
          %v1017 = vld [vmem:[#allocation11 + $0x38] sm:$0xff]
          %v1018 = vld [vmem:[#allocation11 + $0x40] sm:$0xff]
          %v1019 = vld [vmem:[#allocation11 + $0x48] sm:$0xff]
          %v1020 = vld [vmem:[#allocation11 + $0x50] sm:$0xff]
          %v1021 = vld [vmem:[#allocation11 + $0x58] sm:$0xff]
          %v1022 = vld [vmem:[#allocation11 + $0x60] sm:$0xff]
          %v1023 = vld [vmem:[#allocation11 + $0x68] sm:$0xff]
          %v1024 = vld [vmem:[#allocation11 + $0x70] sm:$0xff]
          %v1025 = vld [vmem:[#allocation11 + $0x78] sm:$0xff]
          %1026 = vmatprep.subr.mxu0 0.0
          %1027 = vmatpush1.msra.mxu0 %v1010
          %1028 = vmatprep.subr.mxu0 0.0
          %1029 = vmatpush1.msra.mxu0 %v1011
          %1030 = vmatprep.subr.mxu0 0.0
          %1031 = vmatpush1.msra.mxu0 %v1012
          %1032 = vmatprep.subr.mxu0 0.0
          %1033 = vmatpush1.msra.mxu0 %v1013
          %1034 = vmatprep.subr.mxu0 0.0
          %1035 = vmatpush1.msra.mxu0 %v1014
          %1036 = vmatprep.subr.mxu0 0.0
          %1037 = vmatpush1.msra.mxu0 %v1015
          %1038 = vmatprep.subr.mxu0 0.0
          %1039 = vmatpush1.msra.mxu0 %v1016
          %1040 = vmatprep.subr.mxu0 0.0
          %1041 = vmatpush1.msra.mxu0 %v1017
          %1042 = vmatprep.subr.mxu0 0.0
          %1043 = vmatpush1.msra.mxu0 %v1018
          %1044 = vmatprep.subr.mxu0 0.0
          %1045 = vmatpush1.msra.mxu0 %v1019
          %1046 = vmatprep.subr.mxu0 0.0
          %1047 = vmatpush1.msra.mxu0 %v1020
          %1048 = vmatprep.subr.mxu0 0.0
          %1049 = vmatpush1.msra.mxu0 %v1021
          %1050 = vmatprep.subr.mxu0 0.0
          %1051 = vmatpush1.msra.mxu0 %v1022
          %1052 = vmatprep.subr.mxu0 0.0
          %1053 = vmatpush1.msra.mxu0 %v1023
          %1054 = vmatprep.subr.mxu0 0.0
          %1055 = vmatpush1.msra.mxu0 %v1024
          %1056 = vmatprep.subr.mxu0 0.0
          %1057 = vmatpush1.msra.mxu0 %v1025
          %1058 = vmatprep.subr.mxu0 0.0
          %1059 = vmatpush1.msra.mxu0 0.0
          %1060 = vmatprep.subr.mxu0 0.0
          %1061 = vmatpush1.msra.mxu0 0.0
          %1062 = vmatprep.subr.mxu0 0.0
          %1063 = vmatpush1.msra.mxu0 0.0
          %1064 = vmatprep.subr.mxu0 0.0
          %1065 = vmatpush1.msra.mxu0 0.0
          %1066 = vmatprep.subr.mxu0 0.0
          %1067 = vmatpush1.msra.mxu0 0.0
          %1068 = vmatprep.subr.mxu0 0.0
          %1069 = vmatpush1.msra.mxu0 0.0
          %1070 = vmatprep.subr.mxu0 0.0
          %1071 = vmatpush1.msra.mxu0 0.0
          %1072 = vmatprep.subr.mxu0 0.0
          %1073 = vmatpush1.msra.mxu0 0.0
          %1074 = vmatprep.subr.mxu0 0.0
          %1075 = vmatpush1.msra.mxu0 0.0
          %1076 = vmatprep.subr.mxu0 0.0
          %1077 = vmatpush1.msra.mxu0 0.0
          %1078 = vmatprep.subr.mxu0 0.0
          %1079 = vmatpush1.msra.mxu0 0.0
          %1080 = vmatprep.subr.mxu0 0.0
          %1081 = vmatpush1.msra.mxu0 0.0
          %1082 = vmatprep.subr.mxu0 0.0
          %1083 = vmatpush1.msra.mxu0 0.0
          %1084 = vmatprep.subr.mxu0 0.0
          %1085 = vmatpush1.msra.mxu0 0.0
          %1086 = vmatprep.subr.mxu0 0.0
          %1087 = vmatpush1.msra.mxu0 0.0
          %1088 = vmatprep.subr.mxu0 0.0
          %1089 = vmatpush1.msra.mxu0 0.0
          %1090 = vmatprep.mubr.f32.mxu0 0.0
          %1091 = vmatmul.mubr.f32.gmra.mrb[0].mxu0 %v1009
          %v1092 = vpop.f32.mrb[0].mxu0
          %v1093 = vadd.f32 0.0, %v1092
          %v1094 = vpop.f32.mrb[0].mxu0
          %1095 = vdwg.mxu0
          %v1096 = vmul.f32 %v1093, 0.03125
          %v1097 = vlaneseq
          %v1098 = vshrl.u32 %v1097, 7
          %v1099 = vsub.s32 0, %v1098
          %v1100 = vrot.slane %v1096, %v1099
          %v1101 = vsub.f32 %v1001, %v1100
          %v1102 = vsub.f32 %v1002, %v1100
          %v1103 = vmul.f32 %v1101, %v1101
          %v1104 = vmul.f32 %v1102, %v1102
          %v1105 = vadd.f32 %v1103, %v1104
          %v1106 = vrot.slane %v1105, 4
          %v1107 = vadd.f32 %v1105, %v1106
          %v1108 = vrot.slane %v1107, 2
          %v1109 = vadd.f32 %v1107, %v1108
          %v1110 = vrot.slane %v1109, 1
          %v1111 = vadd.f32 %v1109, %v1110
          %1112 = vmatprep.subr.mxu0 0.0
          %1113 = vmatpush1.msra.mxu0 %v1010
          %1114 = vmatprep.subr.mxu0 0.0
          %1115 = vmatpush1.msra.mxu0 %v1011
          %1116 = vmatprep.subr.mxu0 0.0
          %1117 = vmatpush1.msra.mxu0 %v1012
          %1118 = vmatprep.subr.mxu0 0.0
          %1119 = vmatpush1.msra.mxu0 %v1013
          %1120 = vmatprep.subr.mxu0 0.0
          %1121 = vmatpush1.msra.mxu0 %v1014
          %1122 = vmatprep.subr.mxu0 0.0
          %1123 = vmatpush1.msra.mxu0 %v1015
          %1124 = vmatprep.subr.mxu0 0.0
          %1125 = vmatpush1.msra.mxu0 %v1016
          %1126 = vmatprep.subr.mxu0 0.0
          %1127 = vmatpush1.msra.mxu0 %v1017
          %1128 = vmatprep.subr.mxu0 0.0
          %1129 = vmatpush1.msra.mxu0 %v1018
          %1130 = vmatprep.subr.mxu0 0.0
          %1131 = vmatpush1.msra.mxu0 %v1019
          %1132 = vmatprep.subr.mxu0 0.0
          %1133 = vmatpush1.msra.mxu0 %v1020
          %1134 = vmatprep.subr.mxu0 0.0
          %1135 = vmatpush1.msra.mxu0 %v1021
          %1136 = vmatprep.subr.mxu0 0.0
          %1137 = vmatpush1.msra.mxu0 %v1022
          %1138 = vmatprep.subr.mxu0 0.0
          %1139 = vmatpush1.msra.mxu0 %v1023
          %1140 = vmatprep.subr.mxu0 0.0
          %1141 = vmatpush1.msra.mxu0 %v1024
          %1142 = vmatprep.subr.mxu0 0.0
          %1143 = vmatpush1.msra.mxu0 %v1025
          %1144 = vmatprep.subr.mxu0 0.0
          %1145 = vmatpush1.msra.mxu0 0.0
          %1146 = vmatprep.subr.mxu0 0.0
          %1147 = vmatpush1.msra.mxu0 0.0
          %1148 = vmatprep.subr.mxu0 0.0
          %1149 = vmatpush1.msra.mxu0 0.0
          %1150 = vmatprep.subr.mxu0 0.0
          %1151 = vmatpush1.msra.mxu0 0.0
          %1152 = vmatprep.subr.mxu0 0.0
          %1153 = vmatpush1.msra.mxu0 0.0
          %1154 = vmatprep.subr.mxu0 0.0
          %1155 = vmatpush1.msra.mxu0 0.0
          %1156 = vmatprep.subr.mxu0 0.0
          %1157 = vmatpush1.msra.mxu0 0.0
          %1158 = vmatprep.subr.mxu0 0.0
          %1159 = vmatpush1.msra.mxu0 0.0
          %1160 = vmatprep.subr.mxu0 0.0
          %1161 = vmatpush1.msra.mxu0 0.0
          %1162 = vmatprep.subr.mxu0 0.0
          %1163 = vmatpush1.msra.mxu0 0.0
          %1164 = vmatprep.subr.mxu0 0.0
          %1165 = vmatpush1.msra.mxu0 0.0
          %1166 = vmatprep.subr.mxu0 0.0
          %1167 = vmatpush1.msra.mxu0 0.0
          %1168 = vmatprep.subr.mxu0 0.0
          %1169 = vmatpush1.msra.mxu0 0.0
          %1170 = vmatprep.subr.mxu0 0.0
          %1171 = vmatpush1.msra.mxu0 0.0
          %1172 = vmatprep.subr.mxu0 0.0
          %1173 = vmatpush1.msra.mxu0 0.0
          %1174 = vmatprep.subr.mxu0 0.0
          %1175 = vmatpush1.msra.mxu0 0.0
          %1176 = vmatprep.mubr.f32.mxu0 0.0
          %1177 = vmatmul.mubr.f32.gmra.mrb[0].mxu0 %v1111
          %v1178 = vpop.f32.mrb[0].mxu0
          %v1179 = vadd.f32 0.0, %v1178
          %v1180 = vpop.f32.mrb[0].mxu0
          %1181 = vdwg.mxu0
          %v1182 = vmul.f32 %v1179, 0.03125
          %v1183 = vld [vmem:[%s4] sm:$0x1]
          %v1184 = vadd.f32 %v1182, 1e-05
          %v1185 = vrsqrt.pop %v1184
          %v1186 = vmul.f32 %v1183, %v1185
          %v1187 = vld [vmem:[%s5] sm:$0x1]
          %v1188 = vmul.f32 %v1096, %v1186
          %v1189 = vsub.f32 %v1187, %v1188
          %v1191 = vlaneseq
          %v1192 = vshrl.u32 %v1191, 7
          %v1193 = vsub.s32 0, %v1192
          %v1194 = vrot.slane %v1186, %v1193
          %v1196 = vmul.f32 %v1001, %v1194
          %v1197 = vmul.f32 %v1002, %v1194
          %v1199 = vlaneseq
          %v1200 = vshrl.u32 %v1199, 7
          %v1201 = vsub.s32 0, %v1200
          %v1202 = vrot.slane %v1189, %v1201
          %v1204 = vadd.f32 %v1196, %v1202
          %v1205 = vadd.f32 %v1197, %v1202
          %v1206 = vmax.f32 %v1204, 0.0
          %v1207 = vmax.f32 %v1205, 0.0
          %1208 = vst [vmem:[#allocation12] sm:$0xff] %v1206
          %1209 = vst [vmem:[#allocation12 + $0x8] sm:$0xff] %v1207
        $region84: #{tpu_custom_call.1} parent=47 // pred_fallthru
          _
        // Predicated region
        $region85: #{tpu_custom_call.1} parent=47 // pred_check
          %p1210 = pneg %p186
        $region86: #{tpu_custom_call.1} parent=47 // pred_check_branch
          %1212 = sbr.rel (%p1210) target = $region88
        $region87: #{tpu_custom_call.1} parent=47 // pred_region
          %s1214 = ssub.s32 256, 256
          %1215 = vsyncadd [#allocation7], %s1214
          %s1216 = sshll.u32 [#allocation12], 4
          %s1217 = int_to_ptr.vmem [resolvable:$true] %s1216
          %1222 = dma.vmem_to_hbm [thread:$0]  %s1217, 256, %s7, [#allocation7], 128, 128, 8
        $region88: #{tpu_custom_call.1} parent=47 // pred_fallthru
          _
        // Predicated region
        $region89: #{tpu_custom_call.1} parent=47 // pred_check
          %p1223 = pneg %p186
        $region90: #{tpu_custom_call.1} parent=47 // pred_check_branch
          %1225 = sbr.rel (%p1223) target = $region92
        $region91: #{tpu_custom_call.1} parent=47 // pred_region
          %1226 = dma.done [#allocation7], 256
        $region92: #{tpu_custom_call.1} parent=47 // pred_fallthru
          _
      $region48: #{tpu_custom_call.1} parent=5 // pred_fallthru
        _
      %p1227 = scmp.le.s32.totalorder 2, %s16
      // Predicated region
      $region93: #{tpu_custom_call.1} parent=5 // pred_check
        %p1228 = pneg %p1227
      $region94: #{tpu_custom_call.1} parent=5 // pred_check_branch
        %1230 = sbr.rel (%p1228) target = $region96
      $region95: #{tpu_custom_call.1} parent=5 // pred_region
        %s1231 = ssub.s32 %s16, 2
      $region96: #{tpu_custom_call.1} parent=5 // pred_fallthru
        _
    $region6: #{tpu_custom_call.1} parent=1 // loop_footer
      %s20 = sadd.s32 1, %s16
    $region7: #{tpu_custom_call.1} parent=1 // loop_footer_branch
      %15 = sbr.rel target = $region3
    $region8: #{tpu_custom_call.1} parent=1 // loop_exit
      _
    %1232 = vsyncpa [#allocation6], 1
    %s1233 = scalar_lea.sflag [#allocation6], 1
    %1234 = vsyncpa %s1233, 1
    %1235 = vsyncpa [#allocation9], 1
    %1236 = vsyncpa [#allocation7], 1
    %s1237 = scalar_lea.sflag [#allocation7], 1
    %1238 = vsyncpa %s1237, 1

</llo_original>
